<compile_context>
chip_gen: v6e
topology: v6e:2x2x1
jax: 0.10.0
libtpu: 0.0.40
codegen_flags: <defaults>
</compile_context>

<pallas_src>
import numpy as np
import jax
import jax.numpy as jnp
from jax import lax
from jax.experimental import pallas as pl
from jax.experimental.pallas import tpu as pltpu


def _pick_bt(batch, cap=8):
    """Pick a batch-block size: keep >=2 grid steps when possible (v7x has 2 TCs),
    bound the block for vreg/VMEM headroom. On single-TC chips (v5e/v6e) a larger
    bt (fewer steps) is also fine; override via the `bt` argument if desired."""
    target = min(cap, max(1, batch // 2))
    for d in range(target, 0, -1):
        if batch % d == 0:
            return d
    return 1


def _boundary_masks(H, W, bt):
    """{0,1} f32 masks for the 9 conv taps on the flattened (per-image) lane axis,
    tiled bt times so cross-image wrap taps are zeroed too. Shape (9, 1, bt*H*W)."""
    hw = H * W
    hh = np.arange(hw) // W
    ww = np.arange(hw) % W
    rows = []
    for dy in (-1, 0, 1):
        for dx in (-1, 0, 1):
            m = np.ones(hw, dtype=bool)
            if dy > 0:
                m &= hh < H - dy
            elif dy < 0:
                m &= hh >= -dy
            if dx > 0:
                m &= ww < W - dx
            elif dx < 0:
                m &= ww >= -dx
            rows.append(m.astype(np.float32))
    masks = np.stack(rows, axis=0)                      # (9, HW)
    masks = np.tile(masks, (1, bt)).reshape(9, 1, bt * hw)
    return jnp.asarray(masks)


def reduction_pallas(x_nchw, params, bt=None):
    """x_nchw: (B, Cin, H, W) float32. params: kernel-ready (BN-scale-folded) weights."""
    B, Cin, H, W = x_nchw.shape
    Cout = params["w1"].shape[0]
    HW = H * W
    if bt is None:
        bt = _pick_bt(B)
    assert B % bt == 0, "batch must be divisible by the batch-block size"
    G = B // bt
    Nt = bt * HW  # lanes per grid step

    # Channel-major relayout with batch flattened into the lane axis:
    # lane index = b_local*HW + (h*W + w). Cast to bf16 to halve input HBM traffic.
    x = jnp.transpose(x_nchw.reshape(B, Cin, HW), (1, 0, 2)).reshape(Cin, B * HW)
    x = x.astype(jnp.bfloat16)

    masks = _boundary_masks(H, W, bt)  # (9, 1, Nt) f32, resident

    def kernel(x_ref, mask_ref, w1_ref, w2_ref, w3_ref, bias_ref,
               o_ref, y_ref, col_ref):
        # ---- layer 1: 1x1 conv (BN scale folded into w1) + bias ----
        y_ref[...] = (
            jnp.dot(w1_ref[...], x_ref[...], preferred_element_type=jnp.float32)
            + bias_ref[0]
        )

        # ---- 3x3 conv (pad=1) + folded BN: im2col via lane rolls staged into
        #      VMEM scratch, then a single K=9*Cout MXU dot ----
        def conv3x3_bn(w_ref, bias):
            for t in range(9):
                dy, dx = t // 3 - 1, t % 3 - 1
                off = dy * W + dx
                tap = y_ref[...]                                   # (Cout, Nt) f32
                if off != 0:
                    tap = pltpu.roll(tap, shift=(-off) % Nt, axis=1)
                    tap = tap * mask_ref[t]                        # f32 mask, then cast
                col_ref[pl.ds(t * Cout, Cout), :] = tap.astype(jnp.bfloat16)
            acc = jnp.dot(w_ref[...], col_ref[...],
                          preferred_element_type=jnp.float32)      # (Cout, Nt) f32
            return acc + bias

        y_ref[...] = conv3x3_bn(w2_ref, bias_ref[1])
        o_ref[...] = conv3x3_bn(w3_ref, bias_ref[2]).astype(o_ref.dtype)

    full = lambda shape: pl.BlockSpec(shape, lambda g: (0,) * len(shape))

    out = pl.pallas_call(
        kernel,
        out_shape=jax.ShapeDtypeStruct((Cout, B * HW), jnp.float32),
        grid_spec=pltpu.PrefetchScalarGridSpec(
            num_scalar_prefetch=0,
            grid=(G,),
            in_specs=[
                pl.BlockSpec((Cin, Nt), lambda g: (0, g)),   # x slab (bf16)
                full((9, 1, Nt)),                            # boundary masks (f32, resident)
                full((Cout, Cin)),                           # w1  (scale-folded, bf16)
                full((Cout, 9 * Cout)),                      # w2  (im2col, scale-folded, bf16)
                full((Cout, 9 * Cout)),                      # w3
                full((3, Cout, 1)),                          # packed biases (f32)
            ],
            out_specs=pl.BlockSpec((Cout, Nt), lambda g: (0, g)),
            scratch_shapes=[
                pltpu.VMEM((Cout, Nt), jnp.float32),         # layer intermediate
                pltpu.VMEM((9 * Cout, Nt), jnp.bfloat16),    # im2col staging
            ],
        ),
        compiler_params=pltpu.CompilerParams(
            dimension_semantics=("parallel",)),
    )(x, masks,
      params["w1"], params["w2"], params["w3"], params["bias"])

    # back to NCHW
    out = out.reshape(Cout, B, HW).transpose(1, 0, 2).reshape(B, Cout, H, W)
    return out


def _fold_bn(gamma, beta, mean, var, eps=1e-5):
    # Inference-mode BatchNorm2d folded into per-channel scale/bias.
    scale = gamma / jnp.sqrt(var + eps)
    bias = beta - mean * scale
    return scale, bias


def make_params(key, cin, cout):
    ks = jax.random.split(key, 15)
    # conv weights in PyTorch OIHW layout, bias=False
    w1_oihw = jax.random.normal(ks[0], (cout, cin, 1, 1), jnp.float32) * 0.1
    w2_oihw = jax.random.normal(ks[1], (cout, cout, 3, 3), jnp.float32) * 0.1
    w3_oihw = jax.random.normal(ks[2], (cout, cout, 3, 3), jnp.float32) * 0.1

    def bn(k0, k1, k2, k3):
        gamma = 1.0 + 0.1 * jax.random.normal(k0, (cout,), jnp.float32)
        beta = 0.1 * jax.random.normal(k1, (cout,), jnp.float32)
        mean = 0.1 * jax.random.normal(k2, (cout,), jnp.float32)
        var = jnp.abs(1.0 + 0.1 * jax.random.normal(k3, (cout,), jnp.float32))
        return _fold_bn(gamma, beta, mean, var)

    s1, b1 = bn(*ks[3:7])
    s2, b2 = bn(*ks[7:11])
    s3, b3 = bn(*ks[11:15])

    def im2col_weight(w_oihw):
        # kernel's im2col rows are ordered (dy, dx) outer, input-channel inner
        co, ci, kh, kw = w_oihw.shape
        return jnp.transpose(w_oihw, (0, 2, 3, 1)).reshape(co, kh * kw * ci)

    # Fold BN scale into the conv weights (exact), in f32, before the bf16 cast.
    kernel_params = dict(
        w1=(s1[:, None] * w1_oihw.reshape(cout, cin)).astype(jnp.bfloat16),
        w2=(s2[:, None] * im2col_weight(w2_oihw)).astype(jnp.bfloat16),
        w3=(s3[:, None] * im2col_weight(w3_oihw)).astype(jnp.bfloat16),
        bias=jnp.stack([b1, b2, b3], axis=0).reshape(3, cout, 1).astype(jnp.float32),
    )
    bn_folded = dict(s1=s1, b1=b1, s2=s2, b2=b2, s3=s3, b3=b3)
    return kernel_params, (w1_oihw, w2_oihw, w3_oihw), bn_folded


def reference_jax(x_nchw, oihw_weights, bn):
    """Pure-JAX f32 reference (lax.conv) of the same conv+BN stack, NCHW."""
    w1, w2, w3 = oihw_weights
    dn = ("NCHW", "OIHW", "NCHW")

    def bn_apply(y, s, b):
        return y * s.reshape(1, -1, 1, 1) + b.reshape(1, -1, 1, 1)

    y = lax.conv_general_dilated(x_nchw, w1, (1, 1), "VALID",
                                 dimension_numbers=dn,
                                 precision=lax.Precision.HIGHEST)
    y = bn_apply(y, bn["s1"], bn["b1"])
    y = lax.conv_general_dilated(y, w2, (1, 1), ((1, 1), (1, 1)),
                                 dimension_numbers=dn,
                                 precision=lax.Precision.HIGHEST)
    y = bn_apply(y, bn["s2"], bn["b2"])
    y = lax.conv_general_dilated(y, w3, (1, 1), ((1, 1), (1, 1)),
                                 dimension_numbers=dn,
                                 precision=lax.Precision.HIGHEST)
    y = bn_apply(y, bn["s3"], bn["b3"])
    return y


if __name__ == "__main__":
    B, Cin, H, W = 2, 8, 16, 16
    Cout = 16

    key = jax.random.PRNGKey(0)
    kx, kp = jax.random.split(key)

    # PyTorch-style NCHW input.
    x_nchw = jax.random.normal(kx, (B, Cin, H, W), jnp.float32)

    kernel_params, oihw_weights, bn_folded = make_params(kp, Cin, Cout)

    out = reduction_pallas(x_nchw, kernel_params)
    out = jax.block_until_ready(out)
    assert out.shape == (B, Cout, H, W)

    ref = reference_jax(x_nchw, oihw_weights, bn_folded)
    # bf16 MXU inputs/activations with f32 accumulation vs a full-f32 reference.
    np.testing.assert_allclose(np.asarray(out), np.asarray(ref), rtol=2e-2, atol=2e-2)

    print("KERNEL_OK")
</pallas_src>

<mosaic_0001>
module attributes {stable_mosaic.version = 11 : i64} {
  func.func @kernel(%arg0: i32, %arg1: memref<8x256xbf16, #tpu.memory_space<vmem>>, %arg2: memref<9x1x256xf32, #tpu.memory_space<vmem>>, %arg3: memref<16x8xbf16, #tpu.memory_space<vmem>>, %arg4: memref<16x144xbf16, #tpu.memory_space<vmem>>, %arg5: memref<16x144xbf16, #tpu.memory_space<vmem>>, %arg6: memref<3x16x1xf32, #tpu.memory_space<vmem>>, %arg7: memref<16x256xf32, #tpu.memory_space<vmem>>, %arg8: memref<16x256xf32, #tpu.memory_space<vmem>>, %arg9: memref<144x256xbf16, #tpu.memory_space<vmem>>) attributes {dimension_semantics = [#tpu.dimension_semantics<parallel>], iteration_bounds = array<i64: 2>, scalar_prefetch = 0 : i64, scratch_operands = 2 : i64, tpu.core_type = #tpu.core_type<tc>, window_params = [{transform_indices = @transform_0, window_bounds = array<i64: 8, 256>}, {pipeline_mode = #tpu.pipeline_mode<synchronous>, transform_indices = @transform_1, window_bounds = array<i64: 9, 1, 256>}, {pipeline_mode = #tpu.pipeline_mode<synchronous>, transform_indices = @transform_2, window_bounds = array<i64: 16, 8>}, {pipeline_mode = #tpu.pipeline_mode<synchronous>, transform_indices = @transform_3, window_bounds = array<i64: 16, 144>}, {pipeline_mode = #tpu.pipeline_mode<synchronous>, transform_indices = @transform_4, window_bounds = array<i64: 16, 144>}, {pipeline_mode = #tpu.pipeline_mode<synchronous>, transform_indices = @transform_5, window_bounds = array<i64: 3, 16, 1>}, {transform_indices = @transform_6, window_bounds = array<i64: 16, 256>}]} {
    %c0 = arith.constant 0 : index
    %c0_0 = arith.constant 0 : index
    %0 = vector.load %arg3[%c0, %c0_0] : memref<16x8xbf16, #tpu.memory_space<vmem>>, vector<16x8xbf16>
    %c0_1 = arith.constant 0 : index
    %c0_2 = arith.constant 0 : index
    %1 = vector.load %arg1[%c0_1, %c0_2] : memref<8x256xbf16, #tpu.memory_space<vmem>>, vector<8x256xbf16>
    %cst = arith.constant dense<0.000000e+00> : vector<16x256xf32>
    %2 = tpu.matmul %0, %1, %cst {dimension_numbers = #tpu.dot_dimension_numbers<[1], [0], [0], [1], [0, 0, 1, 1], [], []>} : vector<16x8xbf16>, vector<8x256xbf16>, vector<16x256xf32> -> vector<16x256xf32>
    %c0_3 = arith.constant 0 : index
    %c0_4 = arith.constant 0 : index
    %c0_5 = arith.constant 0 : index
    %3 = vector.load %arg6[%c0_3, %c0_4, %c0_5] : memref<3x16x1xf32, #tpu.memory_space<vmem>>, vector<1x16x1xf32>
    %4 = vector.shape_cast %3 : vector<1x16x1xf32> to vector<16x1xf32>
    %5 = vector.broadcast %4 : vector<16x1xf32> to vector<16x256xf32>
    %6 = arith.addf %2, %5 : vector<16x256xf32>
    %c0_6 = arith.constant 0 : index
    %c0_7 = arith.constant 0 : index
    %7 = vector.load %arg8[%c0_6, %c0_7] : memref<16x256xf32, #tpu.memory_space<vmem>>, vector<16x256xf32>
    tpu.vector_store %arg8[%c0_6, %c0_7], %6 {strides = array<i32>} : memref<16x256xf32, #tpu.memory_space<vmem>>, vector<16x256xf32>,
    %c1 = arith.constant 1 : index
    %c0_8 = arith.constant 0 : index
    %c0_9 = arith.constant 0 : index
    %8 = vector.load %arg6[%c1, %c0_8, %c0_9] : memref<3x16x1xf32, #tpu.memory_space<vmem>>, vector<1x16x1xf32>
    %9 = vector.shape_cast %8 : vector<1x16x1xf32> to vector<16x1xf32>
    %c0_10 = arith.constant 0 : index
    %c0_11 = arith.constant 0 : index
    %10 = vector.load %arg8[%c0_10, %c0_11] : memref<16x256xf32, #tpu.memory_space<vmem>>, vector<16x256xf32>
    %c17_i32 = arith.constant 17 : i32
    %11 = tpu.dynamic_rotate %10 by %c17_i32 dim 1 : vector<16x256xf32>, i32 -> vector<16x256xf32>
    %c0_12 = arith.constant 0 : index
    %c0_13 = arith.constant 0 : index
    %c0_14 = arith.constant 0 : index
    %12 = vector.load %arg2[%c0_12, %c0_13, %c0_14] : memref<9x1x256xf32, #tpu.memory_space<vmem>>, vector<1x1x256xf32>
    %13 = vector.shape_cast %12 : vector<1x1x256xf32> to vector<1x256xf32>
    %14 = vector.broadcast %13 : vector<1x256xf32> to vector<16x256xf32>
    %15 = arith.mulf %11, %14 : vector<16x256xf32>
    %16 = arith.truncf %15 : vector<16x256xf32> to vector<16x256xbf16>
    %c0_15 = arith.constant 0 : index
    %c0_16 = arith.constant 0 : index
    %17 = vector.load %arg9[%c0_15, %c0_16] : memref<144x256xbf16, #tpu.memory_space<vmem>>, vector<16x256xbf16>
    tpu.vector_store %arg9[%c0_15, %c0_16], %16 {strides = array<i32>} : memref<144x256xbf16, #tpu.memory_space<vmem>>, vector<16x256xbf16>,
    %c0_17 = arith.constant 0 : index
    %c0_18 = arith.constant 0 : index
    %18 = vector.load %arg8[%c0_17, %c0_18] : memref<16x256xf32, #tpu.memory_space<vmem>>, vector<16x256xf32>
    %c16_i32 = arith.constant 16 : i32
    %19 = tpu.dynamic_rotate %18 by %c16_i32 dim 1 : vector<16x256xf32>, i32 -> vector<16x256xf32>
    %c1_19 = arith.constant 1 : index
    %c0_20 = arith.constant 0 : index
    %c0_21 = arith.constant 0 : index
    %20 = vector.load %arg2[%c1_19, %c0_20, %c0_21] : memref<9x1x256xf32, #tpu.memory_space<vmem>>, vector<1x1x256xf32>
    %21 = vector.shape_cast %20 : vector<1x1x256xf32> to vector<1x256xf32>
    %22 = vector.broadcast %21 : vector<1x256xf32> to vector<16x256xf32>
    %23 = arith.mulf %19, %22 : vector<16x256xf32>
    %24 = arith.truncf %23 : vector<16x256xf32> to vector<16x256xbf16>
    %c16 = arith.constant 16 : index
    %c0_22 = arith.constant 0 : index
    %25 = vector.load %arg9[%c16, %c0_22] : memref<144x256xbf16, #tpu.memory_space<vmem>>, vector<16x256xbf16>
    tpu.vector_store %arg9[%c16, %c0_22], %24 {strides = array<i32>} : memref<144x256xbf16, #tpu.memory_space<vmem>>, vector<16x256xbf16>,
    %c0_23 = arith.constant 0 : index
    %c0_24 = arith.constant 0 : index
    %26 = vector.load %arg8[%c0_23, %c0_24] : memref<16x256xf32, #tpu.memory_space<vmem>>, vector<16x256xf32>
    %c15_i32 = arith.constant 15 : i32
    %27 = tpu.dynamic_rotate %26 by %c15_i32 dim 1 : vector<16x256xf32>, i32 -> vector<16x256xf32>
    %c2 = arith.constant 2 : index
    %c0_25 = arith.constant 0 : index
    %c0_26 = arith.constant 0 : index
    %28 = vector.load %arg2[%c2, %c0_25, %c0_26] : memref<9x1x256xf32, #tpu.memory_space<vmem>>, vector<1x1x256xf32>
    %29 = vector.shape_cast %28 : vector<1x1x256xf32> to vector<1x256xf32>
    %30 = vector.broadcast %29 : vector<1x256xf32> to vector<16x256xf32>
    %31 = arith.mulf %27, %30 : vector<16x256xf32>
    %32 = arith.truncf %31 : vector<16x256xf32> to vector<16x256xbf16>
    %c32 = arith.constant 32 : index
    %c0_27 = arith.constant 0 : index
    %33 = vector.load %arg9[%c32, %c0_27] : memref<144x256xbf16, #tpu.memory_space<vmem>>, vector<16x256xbf16>
    tpu.vector_store %arg9[%c32, %c0_27], %32 {strides = array<i32>} : memref<144x256xbf16, #tpu.memory_space<vmem>>, vector<16x256xbf16>,
    %c0_28 = arith.constant 0 : index
    %c0_29 = arith.constant 0 : index
    %34 = vector.load %arg8[%c0_28, %c0_29] : memref<16x256xf32, #tpu.memory_space<vmem>>, vector<16x256xf32>
    %c1_i32 = arith.constant 1 : i32
    %35 = tpu.dynamic_rotate %34 by %c1_i32 dim 1 : vector<16x256xf32>, i32 -> vector<16x256xf32>
    %c3 = arith.constant 3 : index
    %c0_30 = arith.constant 0 : index
    %c0_31 = arith.constant 0 : index
    %36 = vector.load %arg2[%c3, %c0_30, %c0_31] : memref<9x1x256xf32, #tpu.memory_space<vmem>>, vector<1x1x256xf32>
    %37 = vector.shape_cast %36 : vector<1x1x256xf32> to vector<1x256xf32>
    %38 = vector.broadcast %37 : vector<1x256xf32> to vector<16x256xf32>
    %39 = arith.mulf %35, %38 : vector<16x256xf32>
    %40 = arith.truncf %39 : vector<16x256xf32> to vector<16x256xbf16>
    %c48 = arith.constant 48 : index
    %c0_32 = arith.constant 0 : index
    %41 = vector.load %arg9[%c48, %c0_32] : memref<144x256xbf16, #tpu.memory_space<vmem>>, vector<16x256xbf16>
    tpu.vector_store %arg9[%c48, %c0_32], %40 {strides = array<i32>} : memref<144x256xbf16, #tpu.memory_space<vmem>>, vector<16x256xbf16>,
    %c0_33 = arith.constant 0 : index
    %c0_34 = arith.constant 0 : index
    %42 = vector.load %arg8[%c0_33, %c0_34] : memref<16x256xf32, #tpu.memory_space<vmem>>, vector<16x256xf32>
    %43 = arith.truncf %42 : vector<16x256xf32> to vector<16x256xbf16>
    %c64 = arith.constant 64 : index
    %c0_35 = arith.constant 0 : index
    %44 = vector.load %arg9[%c64, %c0_35] : memref<144x256xbf16, #tpu.memory_space<vmem>>, vector<16x256xbf16>
    tpu.vector_store %arg9[%c64, %c0_35], %43 {strides = array<i32>} : memref<144x256xbf16, #tpu.memory_space<vmem>>, vector<16x256xbf16>,
    %c0_36 = arith.constant 0 : index
    %c0_37 = arith.constant 0 : index
    %45 = vector.load %arg8[%c0_36, %c0_37] : memref<16x256xf32, #tpu.memory_space<vmem>>, vector<16x256xf32>
    %c255_i32 = arith.constant 255 : i32
    %46 = tpu.dynamic_rotate %45 by %c255_i32 dim 1 : vector<16x256xf32>, i32 -> vector<16x256xf32>
    %c5 = arith.constant 5 : index
    %c0_38 = arith.constant 0 : index
    %c0_39 = arith.constant 0 : index
    %47 = vector.load %arg2[%c5, %c0_38, %c0_39] : memref<9x1x256xf32, #tpu.memory_space<vmem>>, vector<1x1x256xf32>
    %48 = vector.shape_cast %47 : vector<1x1x256xf32> to vector<1x256xf32>
    %49 = vector.broadcast %48 : vector<1x256xf32> to vector<16x256xf32>
    %50 = arith.mulf %46, %49 : vector<16x256xf32>
    %51 = arith.truncf %50 : vector<16x256xf32> to vector<16x256xbf16>
    %c80 = arith.constant 80 : index
    %c0_40 = arith.constant 0 : index
    %52 = vector.load %arg9[%c80, %c0_40] : memref<144x256xbf16, #tpu.memory_space<vmem>>, vector<16x256xbf16>
    tpu.vector_store %arg9[%c80, %c0_40], %51 {strides = array<i32>} : memref<144x256xbf16, #tpu.memory_space<vmem>>, vector<16x256xbf16>,
    %c0_41 = arith.constant 0 : index
    %c0_42 = arith.constant 0 : index
    %53 = vector.load %arg8[%c0_41, %c0_42] : memref<16x256xf32, #tpu.memory_space<vmem>>, vector<16x256xf32>
    %c241_i32 = arith.constant 241 : i32
    %54 = tpu.dynamic_rotate %53 by %c241_i32 dim 1 : vector<16x256xf32>, i32 -> vector<16x256xf32>
    %c6 = arith.constant 6 : index
    %c0_43 = arith.constant 0 : index
    %c0_44 = arith.constant 0 : index
    %55 = vector.load %arg2[%c6, %c0_43, %c0_44] : memref<9x1x256xf32, #tpu.memory_space<vmem>>, vector<1x1x256xf32>
    %56 = vector.shape_cast %55 : vector<1x1x256xf32> to vector<1x256xf32>
    %57 = vector.broadcast %56 : vector<1x256xf32> to vector<16x256xf32>
    %58 = arith.mulf %54, %57 : vector<16x256xf32>
    %59 = arith.truncf %58 : vector<16x256xf32> to vector<16x256xbf16>
    %c96 = arith.constant 96 : index
    %c0_45 = arith.constant 0 : index
    %60 = vector.load %arg9[%c96, %c0_45] : memref<144x256xbf16, #tpu.memory_space<vmem>>, vector<16x256xbf16>
    tpu.vector_store %arg9[%c96, %c0_45], %59 {strides = array<i32>} : memref<144x256xbf16, #tpu.memory_space<vmem>>, vector<16x256xbf16>,
    %c0_46 = arith.constant 0 : index
    %c0_47 = arith.constant 0 : index
    %61 = vector.load %arg8[%c0_46, %c0_47] : memref<16x256xf32, #tpu.memory_space<vmem>>, vector<16x256xf32>
    %c240_i32 = arith.constant 240 : i32
    %62 = tpu.dynamic_rotate %61 by %c240_i32 dim 1 : vector<16x256xf32>, i32 -> vector<16x256xf32>
    %c7 = arith.constant 7 : index
    %c0_48 = arith.constant 0 : index
    %c0_49 = arith.constant 0 : index
    %63 = vector.load %arg2[%c7, %c0_48, %c0_49] : memref<9x1x256xf32, #tpu.memory_space<vmem>>, vector<1x1x256xf32>
    %64 = vector.shape_cast %63 : vector<1x1x256xf32> to vector<1x256xf32>
    %65 = vector.broadcast %64 : vector<1x256xf32> to vector<16x256xf32>
    %66 = arith.mulf %62, %65 : vector<16x256xf32>
    %67 = arith.truncf %66 : vector<16x256xf32> to vector<16x256xbf16>
    %c112 = arith.constant 112 : index
    %c0_50 = arith.constant 0 : index
    %68 = vector.load %arg9[%c112, %c0_50] : memref<144x256xbf16, #tpu.memory_space<vmem>>, vector<16x256xbf16>
    tpu.vector_store %arg9[%c112, %c0_50], %67 {strides = array<i32>} : memref<144x256xbf16, #tpu.memory_space<vmem>>, vector<16x256xbf16>,
    %c0_51 = arith.constant 0 : index
    %c0_52 = arith.constant 0 : index
    %69 = vector.load %arg8[%c0_51, %c0_52] : memref<16x256xf32, #tpu.memory_space<vmem>>, vector<16x256xf32>
    %c239_i32 = arith.constant 239 : i32
    %70 = tpu.dynamic_rotate %69 by %c239_i32 dim 1 : vector<16x256xf32>, i32 -> vector<16x256xf32>
    %c8 = arith.constant 8 : index
    %c0_53 = arith.constant 0 : index
    %c0_54 = arith.constant 0 : index
    %71 = vector.load %arg2[%c8, %c0_53, %c0_54] : memref<9x1x256xf32, #tpu.memory_space<vmem>>, vector<1x1x256xf32>
    %72 = vector.shape_cast %71 : vector<1x1x256xf32> to vector<1x256xf32>
    %73 = vector.broadcast %72 : vector<1x256xf32> to vector<16x256xf32>
    %74 = arith.mulf %70, %73 : vector<16x256xf32>
    %75 = arith.truncf %74 : vector<16x256xf32> to vector<16x256xbf16>
    %c128 = arith.constant 128 : index
    %c0_55 = arith.constant 0 : index
    %76 = vector.load %arg9[%c128, %c0_55] : memref<144x256xbf16, #tpu.memory_space<vmem>>, vector<16x256xbf16>
    tpu.vector_store %arg9[%c128, %c0_55], %75 {strides = array<i32>} : memref<144x256xbf16, #tpu.memory_space<vmem>>, vector<16x256xbf16>,
    %c0_56 = arith.constant 0 : index
    %c0_57 = arith.constant 0 : index
    %77 = vector.load %arg4[%c0_56, %c0_57] : memref<16x144xbf16, #tpu.memory_space<vmem>>, vector<16x144xbf16>
    %c0_58 = arith.constant 0 : index
    %c0_59 = arith.constant 0 : index
    %78 = vector.load %arg9[%c0_58, %c0_59] : memref<144x256xbf16, #tpu.memory_space<vmem>>, vector<144x256xbf16>
    %cst_60 = arith.constant dense<0.000000e+00> : vector<16x256xf32>
    %79 = tpu.matmul %77, %78, %cst_60 {dimension_numbers = #tpu.dot_dimension_numbers<[1], [0], [0], [1], [0, 0, 1, 1], [], []>} : vector<16x144xbf16>, vector<144x256xbf16>, vector<16x256xf32> -> vector<16x256xf32>
    %80 = vector.broadcast %9 : vector<16x1xf32> to vector<16x256xf32>
    %81 = arith.addf %79, %80 : vector<16x256xf32>
    %c0_61 = arith.constant 0 : index
    %c0_62 = arith.constant 0 : index
    %82 = vector.load %arg8[%c0_61, %c0_62] : memref<16x256xf32, #tpu.memory_space<vmem>>, vector<16x256xf32>
    tpu.vector_store %arg8[%c0_61, %c0_62], %81 {strides = array<i32>} : memref<16x256xf32, #tpu.memory_space<vmem>>, vector<16x256xf32>,
    %c2_63 = arith.constant 2 : index
    %c0_64 = arith.constant 0 : index
    %c0_65 = arith.constant 0 : index
    %83 = vector.load %arg6[%c2_63, %c0_64, %c0_65] : memref<3x16x1xf32, #tpu.memory_space<vmem>>, vector<1x16x1xf32>
    %84 = vector.shape_cast %83 : vector<1x16x1xf32> to vector<16x1xf32>
    %c0_66 = arith.constant 0 : index
    %c0_67 = arith.constant 0 : index
    %85 = vector.load %arg8[%c0_66, %c0_67] : memref<16x256xf32, #tpu.memory_space<vmem>>, vector<16x256xf32>
    %c17_i32_68 = arith.constant 17 : i32
    %86 = tpu.dynamic_rotate %85 by %c17_i32_68 dim 1 : vector<16x256xf32>, i32 -> vector<16x256xf32>
    %c0_69 = arith.constant 0 : index
    %c0_70 = arith.constant 0 : index
    %c0_71 = arith.constant 0 : index
    %87 = vector.load %arg2[%c0_69, %c0_70, %c0_71] : memref<9x1x256xf32, #tpu.memory_space<vmem>>, vector<1x1x256xf32>
    %88 = vector.shape_cast %87 : vector<1x1x256xf32> to vector<1x256xf32>
    %89 = vector.broadcast %88 : vector<1x256xf32> to vector<16x256xf32>
    %90 = arith.mulf %86, %89 : vector<16x256xf32>
    %91 = arith.truncf %90 : vector<16x256xf32> to vector<16x256xbf16>
    %c0_72 = arith.constant 0 : index
    %c0_73 = arith.constant 0 : index
    %92 = vector.load %arg9[%c0_72, %c0_73] : memref<144x256xbf16, #tpu.memory_space<vmem>>, vector<16x256xbf16>
    tpu.vector_store %arg9[%c0_72, %c0_73], %91 {strides = array<i32>} : memref<144x256xbf16, #tpu.memory_space<vmem>>, vector<16x256xbf16>,
    %c0_74 = arith.constant 0 : index
    %c0_75 = arith.constant 0 : index
    %93 = vector.load %arg8[%c0_74, %c0_75] : memref<16x256xf32, #tpu.memory_space<vmem>>, vector<16x256xf32>
    %c16_i32_76 = arith.constant 16 : i32
    %94 = tpu.dynamic_rotate %93 by %c16_i32_76 dim 1 : vector<16x256xf32>, i32 -> vector<16x256xf32>
    %c1_77 = arith.constant 1 : index
    %c0_78 = arith.constant 0 : index
    %c0_79 = arith.constant 0 : index
    %95 = vector.load %arg2[%c1_77, %c0_78, %c0_79] : memref<9x1x256xf32, #tpu.memory_space<vmem>>, vector<1x1x256xf32>
    %96 = vector.shape_cast %95 : vector<1x1x256xf32> to vector<1x256xf32>
    %97 = vector.broadcast %96 : vector<1x256xf32> to vector<16x256xf32>
    %98 = arith.mulf %94, %97 : vector<16x256xf32>
    %99 = arith.truncf %98 : vector<16x256xf32> to vector<16x256xbf16>
    %c16_80 = arith.constant 16 : index
    %c0_81 = arith.constant 0 : index
    %100 = vector.load %arg9[%c16_80, %c0_81] : memref<144x256xbf16, #tpu.memory_space<vmem>>, vector<16x256xbf16>
    tpu.vector_store %arg9[%c16_80, %c0_81], %99 {strides = array<i32>} : memref<144x256xbf16, #tpu.memory_space<vmem>>, vector<16x256xbf16>,
    %c0_82 = arith.constant 0 : index
    %c0_83 = arith.constant 0 : index
    %101 = vector.load %arg8[%c0_82, %c0_83] : memref<16x256xf32, #tpu.memory_space<vmem>>, vector<16x256xf32>
    %c15_i32_84 = arith.constant 15 : i32
    %102 = tpu.dynamic_rotate %101 by %c15_i32_84 dim 1 : vector<16x256xf32>, i32 -> vector<16x256xf32>
    %c2_85 = arith.constant 2 : index
    %c0_86 = arith.constant 0 : index
    %c0_87 = arith.constant 0 : index
    %103 = vector.load %arg2[%c2_85, %c0_86, %c0_87] : memref<9x1x256xf32, #tpu.memory_space<vmem>>, vector<1x1x256xf32>
    %104 = vector.shape_cast %103 : vector<1x1x256xf32> to vector<1x256xf32>
    %105 = vector.broadcast %104 : vector<1x256xf32> to vector<16x256xf32>
    %106 = arith.mulf %102, %105 : vector<16x256xf32>
    %107 = arith.truncf %106 : vector<16x256xf32> to vector<16x256xbf16>
    %c32_88 = arith.constant 32 : index
    %c0_89 = arith.constant 0 : index
    %108 = vector.load %arg9[%c32_88, %c0_89] : memref<144x256xbf16, #tpu.memory_space<vmem>>, vector<16x256xbf16>
    tpu.vector_store %arg9[%c32_88, %c0_89], %107 {strides = array<i32>} : memref<144x256xbf16, #tpu.memory_space<vmem>>, vector<16x256xbf16>,
    %c0_90 = arith.constant 0 : index
    %c0_91 = arith.constant 0 : index
    %109 = vector.load %arg8[%c0_90, %c0_91] : memref<16x256xf32, #tpu.memory_space<vmem>>, vector<16x256xf32>
    %c1_i32_92 = arith.constant 1 : i32
    %110 = tpu.dynamic_rotate %109 by %c1_i32_92 dim 1 : vector<16x256xf32>, i32 -> vector<16x256xf32>
    %c3_93 = arith.constant 3 : index
    %c0_94 = arith.constant 0 : index
    %c0_95 = arith.constant 0 : index
    %111 = vector.load %arg2[%c3_93, %c0_94, %c0_95] : memref<9x1x256xf32, #tpu.memory_space<vmem>>, vector<1x1x256xf32>
    %112 = vector.shape_cast %111 : vector<1x1x256xf32> to vector<1x256xf32>
    %113 = vector.broadcast %112 : vector<1x256xf32> to vector<16x256xf32>
    %114 = arith.mulf %110, %113 : vector<16x256xf32>
    %115 = arith.truncf %114 : vector<16x256xf32> to vector<16x256xbf16>
    %c48_96 = arith.constant 48 : index
    %c0_97 = arith.constant 0 : index
    %116 = vector.load %arg9[%c48_96, %c0_97] : memref<144x256xbf16, #tpu.memory_space<vmem>>, vector<16x256xbf16>
    tpu.vector_store %arg9[%c48_96, %c0_97], %115 {strides = array<i32>} : memref<144x256xbf16, #tpu.memory_space<vmem>>, vector<16x256xbf16>,
    %c0_98 = arith.constant 0 : index
    %c0_99 = arith.constant 0 : index
    %117 = vector.load %arg8[%c0_98, %c0_99] : memref<16x256xf32, #tpu.memory_space<vmem>>, vector<16x256xf32>
    %118 = arith.truncf %117 : vector<16x256xf32> to vector<16x256xbf16>
    %c64_100 = arith.constant 64 : index
    %c0_101 = arith.constant 0 : index
    %119 = vector.load %arg9[%c64_100, %c0_101] : memref<144x256xbf16, #tpu.memory_space<vmem>>, vector<16x256xbf16>
    tpu.vector_store %arg9[%c64_100, %c0_101], %118 {strides = array<i32>} : memref<144x256xbf16, #tpu.memory_space<vmem>>, vector<16x256xbf16>,
    %c0_102 = arith.constant 0 : index
    %c0_103 = arith.constant 0 : index
    %120 = vector.load %arg8[%c0_102, %c0_103] : memref<16x256xf32, #tpu.memory_space<vmem>>, vector<16x256xf32>
    %c255_i32_104 = arith.constant 255 : i32
    %121 = tpu.dynamic_rotate %120 by %c255_i32_104 dim 1 : vector<16x256xf32>, i32 -> vector<16x256xf32>
    %c5_105 = arith.constant 5 : index
    %c0_106 = arith.constant 0 : index
    %c0_107 = arith.constant 0 : index
    %122 = vector.load %arg2[%c5_105, %c0_106, %c0_107] : memref<9x1x256xf32, #tpu.memory_space<vmem>>, vector<1x1x256xf32>
    %123 = vector.shape_cast %122 : vector<1x1x256xf32> to vector<1x256xf32>
    %124 = vector.broadcast %123 : vector<1x256xf32> to vector<16x256xf32>
    %125 = arith.mulf %121, %124 : vector<16x256xf32>
    %126 = arith.truncf %125 : vector<16x256xf32> to vector<16x256xbf16>
    %c80_108 = arith.constant 80 : index
    %c0_109 = arith.constant 0 : index
    %127 = vector.load %arg9[%c80_108, %c0_109] : memref<144x256xbf16, #tpu.memory_space<vmem>>, vector<16x256xbf16>
    tpu.vector_store %arg9[%c80_108, %c0_109], %126 {strides = array<i32>} : memref<144x256xbf16, #tpu.memory_space<vmem>>, vector<16x256xbf16>,
    %c0_110 = arith.constant 0 : index
    %c0_111 = arith.constant 0 : index
    %128 = vector.load %arg8[%c0_110, %c0_111] : memref<16x256xf32, #tpu.memory_space<vmem>>, vector<16x256xf32>
    %c241_i32_112 = arith.constant 241 : i32
    %129 = tpu.dynamic_rotate %128 by %c241_i32_112 dim 1 : vector<16x256xf32>, i32 -> vector<16x256xf32>
    %c6_113 = arith.constant 6 : index
    %c0_114 = arith.constant 0 : index
    %c0_115 = arith.constant 0 : index
    %130 = vector.load %arg2[%c6_113, %c0_114, %c0_115] : memref<9x1x256xf32, #tpu.memory_space<vmem>>, vector<1x1x256xf32>
    %131 = vector.shape_cast %130 : vector<1x1x256xf32> to vector<1x256xf32>
    %132 = vector.broadcast %131 : vector<1x256xf32> to vector<16x256xf32>
    %133 = arith.mulf %129, %132 : vector<16x256xf32>
    %134 = arith.truncf %133 : vector<16x256xf32> to vector<16x256xbf16>
    %c96_116 = arith.constant 96 : index
    %c0_117 = arith.constant 0 : index
    %135 = vector.load %arg9[%c96_116, %c0_117] : memref<144x256xbf16, #tpu.memory_space<vmem>>, vector<16x256xbf16>
    tpu.vector_store %arg9[%c96_116, %c0_117], %134 {strides = array<i32>} : memref<144x256xbf16, #tpu.memory_space<vmem>>, vector<16x256xbf16>,
    %c0_118 = arith.constant 0 : index
    %c0_119 = arith.constant 0 : index
    %136 = vector.load %arg8[%c0_118, %c0_119] : memref<16x256xf32, #tpu.memory_space<vmem>>, vector<16x256xf32>
    %c240_i32_120 = arith.constant 240 : i32
    %137 = tpu.dynamic_rotate %136 by %c240_i32_120 dim 1 : vector<16x256xf32>, i32 -> vector<16x256xf32>
    %c7_121 = arith.constant 7 : index
    %c0_122 = arith.constant 0 : index
    %c0_123 = arith.constant 0 : index
    %138 = vector.load %arg2[%c7_121, %c0_122, %c0_123] : memref<9x1x256xf32, #tpu.memory_space<vmem>>, vector<1x1x256xf32>
    %139 = vector.shape_cast %138 : vector<1x1x256xf32> to vector<1x256xf32>
    %140 = vector.broadcast %139 : vector<1x256xf32> to vector<16x256xf32>
    %141 = arith.mulf %137, %140 : vector<16x256xf32>
    %142 = arith.truncf %141 : vector<16x256xf32> to vector<16x256xbf16>
    %c112_124 = arith.constant 112 : index
    %c0_125 = arith.constant 0 : index
    %143 = vector.load %arg9[%c112_124, %c0_125] : memref<144x256xbf16, #tpu.memory_space<vmem>>, vector<16x256xbf16>
    tpu.vector_store %arg9[%c112_124, %c0_125], %142 {strides = array<i32>} : memref<144x256xbf16, #tpu.memory_space<vmem>>, vector<16x256xbf16>,
    %c0_126 = arith.constant 0 : index
    %c0_127 = arith.constant 0 : index
    %144 = vector.load %arg8[%c0_126, %c0_127] : memref<16x256xf32, #tpu.memory_space<vmem>>, vector<16x256xf32>
    %c239_i32_128 = arith.constant 239 : i32
    %145 = tpu.dynamic_rotate %144 by %c239_i32_128 dim 1 : vector<16x256xf32>, i32 -> vector<16x256xf32>
    %c8_129 = arith.constant 8 : index
    %c0_130 = arith.constant 0 : index
    %c0_131 = arith.constant 0 : index
    %146 = vector.load %arg2[%c8_129, %c0_130, %c0_131] : memref<9x1x256xf32, #tpu.memory_space<vmem>>, vector<1x1x256xf32>
    %147 = vector.shape_cast %146 : vector<1x1x256xf32> to vector<1x256xf32>
    %148 = vector.broadcast %147 : vector<1x256xf32> to vector<16x256xf32>
    %149 = arith.mulf %145, %148 : vector<16x256xf32>
    %150 = arith.truncf %149 : vector<16x256xf32> to vector<16x256xbf16>
    %c128_132 = arith.constant 128 : index
    %c0_133 = arith.constant 0 : index
    %151 = vector.load %arg9[%c128_132, %c0_133] : memref<144x256xbf16, #tpu.memory_space<vmem>>, vector<16x256xbf16>
    tpu.vector_store %arg9[%c128_132, %c0_133], %150 {strides = array<i32>} : memref<144x256xbf16, #tpu.memory_space<vmem>>, vector<16x256xbf16>,
    %c0_134 = arith.constant 0 : index
    %c0_135 = arith.constant 0 : index
    %152 = vector.load %arg5[%c0_134, %c0_135] : memref<16x144xbf16, #tpu.memory_space<vmem>>, vector<16x144xbf16>
    %c0_136 = arith.constant 0 : index
    %c0_137 = arith.constant 0 : index
    %153 = vector.load %arg9[%c0_136, %c0_137] : memref<144x256xbf16, #tpu.memory_space<vmem>>, vector<144x256xbf16>
    %cst_138 = arith.constant dense<0.000000e+00> : vector<16x256xf32>
    %154 = tpu.matmul %152, %153, %cst_138 {dimension_numbers = #tpu.dot_dimension_numbers<[1], [0], [0], [1], [0, 0, 1, 1], [], []>} : vector<16x144xbf16>, vector<144x256xbf16>, vector<16x256xf32> -> vector<16x256xf32>
    %155 = vector.broadcast %84 : vector<16x1xf32> to vector<16x256xf32>
    %156 = arith.addf %154, %155 : vector<16x256xf32>
    %c0_139 = arith.constant 0 : index
    %c0_140 = arith.constant 0 : index
    %157 = vector.load %arg7[%c0_139, %c0_140] : memref<16x256xf32, #tpu.memory_space<vmem>>, vector<16x256xf32>
    tpu.vector_store %arg7[%c0_139, %c0_140], %156 {strides = array<i32>} : memref<16x256xf32, #tpu.memory_space<vmem>>, vector<16x256xf32>,
    return
  }
  func.func @transform_0(%arg0: i32) -> (i32, i32) {
    %c0_i32 = arith.constant 0 : i32
    %c0_i32_0 = arith.constant 0 : i32
    return %c0_i32, %arg0 : i32, i32
  }
  func.func @transform_1(%arg0: i32) -> (i32, i32, i32) {
    %c0_i32 = arith.constant 0 : i32
    %c0_i32_0 = arith.constant 0 : i32
    %c0_i32_1 = arith.constant 0 : i32
    %c0_i32_2 = arith.constant 0 : i32
    return %c0_i32, %c0_i32_0, %c0_i32_1 : i32, i32, i32
  }
  func.func @transform_2(%arg0: i32) -> (i32, i32) {
    %c0_i32 = arith.constant 0 : i32
    %c0_i32_0 = arith.constant 0 : i32
    %c0_i32_1 = arith.constant 0 : i32
    return %c0_i32, %c0_i32_0 : i32, i32
  }
  func.func @transform_3(%arg0: i32) -> (i32, i32) {
    %c0_i32 = arith.constant 0 : i32
    %c0_i32_0 = arith.constant 0 : i32
    %c0_i32_1 = arith.constant 0 : i32
    return %c0_i32, %c0_i32_0 : i32, i32
  }
  func.func @transform_4(%arg0: i32) -> (i32, i32) {
    %c0_i32 = arith.constant 0 : i32
    %c0_i32_0 = arith.constant 0 : i32
    %c0_i32_1 = arith.constant 0 : i32
    return %c0_i32, %c0_i32_0 : i32, i32
  }
  func.func @transform_5(%arg0: i32) -> (i32, i32, i32) {
    %c0_i32 = arith.constant 0 : i32
    %c0_i32_0 = arith.constant 0 : i32
    %c0_i32_1 = arith.constant 0 : i32
    %c0_i32_2 = arith.constant 0 : i32
    return %c0_i32, %c0_i32_0, %c0_i32_1 : i32, i32, i32
  }
  func.func @transform_6(%arg0: i32) -> (i32, i32) {
    %c0_i32 = arith.constant 0 : i32
    %c0_i32_0 = arith.constant 0 : i32
    return %c0_i32, %arg0 : i32, i32
  }
}

</mosaic_0001>

<llo_original>
// kernel: tpu_custom_call.1
$region0: #{tpu_custom_call.1}
  #allocation0 [shape = 'u32[]', space=smem, size = 0x4, offset = 0x4, fixed_abs, tag = 'smem constant byte address 0x4 - core index']
  #allocation1 [shape = 'u32[144,128]{1,0:T(1,128)}', space=vmem, size = 0x12000, scoped, tag = 'internal scratch']
  #allocation2 [shape = 'f32[16,256]{1,0:T(8,128)}', space=vmem, size = 0x4000, scoped, tag = 'scratch operand']
  #allocation3 [shape = 'bf16[144,256]{1,0:T(8,128)(2,1)}', space=vmem, size = 0x12000, scoped, tag = 'scratch operand']
  %s0 = inlined_call_operand.vmem [shape: bf16[8,512], index: 0, kind: input, shape index: {}]
  %s1 = inlined_call_operand.vmem [shape: f32[9,1,256], index: 1, kind: input, shape index: {}]
  %s2 = inlined_call_operand.vmem [shape: bf16[16,8], index: 2, kind: input, shape index: {}]
  %s3 = inlined_call_operand.vmem [shape: bf16[16,144], index: 3, kind: input, shape index: {}]
  %s4 = inlined_call_operand.vmem [shape: bf16[16,144], index: 4, kind: input, shape index: {}]
  %s5 = inlined_call_operand.vmem [shape: f32[3,16,1], index: 5, kind: input, shape index: {}]
  %s6 = inlined_call_operand.hbm [shape: f32[16,512], index: 6, kind: output, shape index: {}]
  %s7 = sld [smem:[#allocation0]]
  $region57: #{tpu_custom_call.1} parent=0
    _
  %s9 = ssub.s32 1, %s7
  %s10 = scalar_select 0, %s9, %s7
  $region1: #{tpu_custom_call.1} parent=0
    #allocation4 [shape = 'u8[32768]{0}', space=vmem, size = 0x8000, scoped, tag = 'output window, operand 0']
    #allocation5 [shape = 's32[2]{0}', space=sflag, size = 0x8, scoped, tag = 'scoped memory for tpu_custom_call.1']
    %11 = vsyncpa [#allocation5], 0
    %s12 = scalar_lea.sflag [#allocation5], 1
    %13 = vsyncpa %s12, 0
    loop: start=0, step=1, limit=4
    $region2: #{tpu_custom_call.1} parent=1 // loop_pre_header
      _
    $region3: #{tpu_custom_call.1} parent=1 // loop_header
      %s15 = sphi 0, %s19
      %p16 = scmp.ge.s32.totalorder %s15, 4
      %s25 = sphi 0, %s27
      %s28 = sphi 0, %s25
      %s29 = sphi 0, %s28
      %s45 = sphi 0, %s29
      %s49 = sphi 0, %s49
      %s51 = sphi 0, %s49
      %s52 = sphi 0, %s51
      %s66 = sphi 0, %s52
      %s70 = sphi 0, %s70
      %s72 = sphi 0, %s70
      %s73 = sphi 0, %s72
      %s87 = sphi 0, %s73
      %s91 = sphi 0, %s91
      %s93 = sphi 0, %s91
      %s94 = sphi 0, %s93
      %s108 = sphi 0, %s94
      %s112 = sphi 0, %s112
      %s114 = sphi 0, %s112
      %s115 = sphi 0, %s114
      %s129 = sphi 0, %s115
      %s133 = sphi 0, %s133
      %s135 = sphi 0, %s133
      %s136 = sphi 0, %s135
      %s150 = sphi 0, %s136
      %s156 = sphi 0, %s158
      %s159 = sphi 0, %s156
      %s160 = sphi 0, %s159
      %s176 = sphi 0, %s160
    $region4: #{tpu_custom_call.1} parent=1 // loop_header_branch
      %18 = sbr.rel (%p16) target = $region8
    $region5: #{tpu_custom_call.1} parent=1 // loop_body
      %s20 = ssub.s32 %s15, 1
      %s21 = ssub.s32 %s15, 2
      %s22 = sadd.s32 %s15, 1
      %s23 = ssub.s32 %s15, %s22
      %p24 = scmp.eq.s32.totalorder %s23, 0
      %s26 = sadd.s32 %s25, 1
      %s27 = scalar_select %p24, %s25, %s26
      %p30 = pneg %p24
      %p31 = scmp.eq.s32.totalorder %s15, 1
      %p32 = por %p30, %p31
      %p33 = scmp.ne.s32.totalorder %s25, %s28
      %p34 = scmp.eq.s32.totalorder %s15, 0
      %p35 = por %p33, %p34
      %p36 = scmp.ne.s32.totalorder %s25, %s28
      %p37 = scmp.eq.s32.totalorder %s20, 1
      %p38 = por %p36, %p37
      %p39 = scmp.ne.s32.totalorder %s28, %s29
      %p40 = scmp.eq.s32.totalorder %s20, 0
      %p41 = por %p39, %p40
      %p42 = scmp.ne.s32.totalorder %s28, %s29
      %p43 = scmp.eq.s32.totalorder %s21, 1
      %p44 = por %p42, %p43
      %p46 = scmp.ne.s32.totalorder %s29, %s45
      %p47 = scmp.eq.s32.totalorder %s21, 0
      %p48 = por %p46, %p47
      %s50 = sadd.s32 %s49, 1
      %p53 = scmp.eq.s32.totalorder %s15, 1
      %p54 = scmp.ne.s32.totalorder %s49, %s51
      %p55 = scmp.eq.s32.totalorder %s15, 0
      %p56 = por %p54, %p55
      %p57 = scmp.ne.s32.totalorder %s49, %s51
      %p58 = scmp.eq.s32.totalorder %s20, 1
      %p59 = por %p57, %p58
      %p60 = scmp.ne.s32.totalorder %s51, %s52
      %p61 = scmp.eq.s32.totalorder %s20, 0
      %p62 = por %p60, %p61
      %p63 = scmp.ne.s32.totalorder %s51, %s52
      %p64 = scmp.eq.s32.totalorder %s21, 1
      %p65 = por %p63, %p64
      %p67 = scmp.ne.s32.totalorder %s52, %s66
      %p68 = scmp.eq.s32.totalorder %s21, 0
      %p69 = por %p67, %p68
      %s71 = sadd.s32 %s70, 1
      %p74 = scmp.eq.s32.totalorder %s15, 1
      %p75 = scmp.ne.s32.totalorder %s70, %s72
      %p76 = scmp.eq.s32.totalorder %s15, 0
      %p77 = por %p75, %p76
      %p78 = scmp.ne.s32.totalorder %s70, %s72
      %p79 = scmp.eq.s32.totalorder %s20, 1
      %p80 = por %p78, %p79
      %p81 = scmp.ne.s32.totalorder %s72, %s73
      %p82 = scmp.eq.s32.totalorder %s20, 0
      %p83 = por %p81, %p82
      %p84 = scmp.ne.s32.totalorder %s72, %s73
      %p85 = scmp.eq.s32.totalorder %s21, 1
      %p86 = por %p84, %p85
      %p88 = scmp.ne.s32.totalorder %s73, %s87
      %p89 = scmp.eq.s32.totalorder %s21, 0
      %p90 = por %p88, %p89
      %s92 = sadd.s32 %s91, 1
      %p95 = scmp.eq.s32.totalorder %s15, 1
      %p96 = scmp.ne.s32.totalorder %s91, %s93
      %p97 = scmp.eq.s32.totalorder %s15, 0
      %p98 = por %p96, %p97
      %p99 = scmp.ne.s32.totalorder %s91, %s93
      %p100 = scmp.eq.s32.totalorder %s20, 1
      %p101 = por %p99, %p100
      %p102 = scmp.ne.s32.totalorder %s93, %s94
      %p103 = scmp.eq.s32.totalorder %s20, 0
      %p104 = por %p102, %p103
      %p105 = scmp.ne.s32.totalorder %s93, %s94
      %p106 = scmp.eq.s32.totalorder %s21, 1
      %p107 = por %p105, %p106
      %p109 = scmp.ne.s32.totalorder %s94, %s108
      %p110 = scmp.eq.s32.totalorder %s21, 0
      %p111 = por %p109, %p110
      %s113 = sadd.s32 %s112, 1
      %p116 = scmp.eq.s32.totalorder %s15, 1
      %p117 = scmp.ne.s32.totalorder %s112, %s114
      %p118 = scmp.eq.s32.totalorder %s15, 0
      %p119 = por %p117, %p118
      %p120 = scmp.ne.s32.totalorder %s112, %s114
      %p121 = scmp.eq.s32.totalorder %s20, 1
      %p122 = por %p120, %p121
      %p123 = scmp.ne.s32.totalorder %s114, %s115
      %p124 = scmp.eq.s32.totalorder %s20, 0
      %p125 = por %p123, %p124
      %p126 = scmp.ne.s32.totalorder %s114, %s115
      %p127 = scmp.eq.s32.totalorder %s21, 1
      %p128 = por %p126, %p127
      %p130 = scmp.ne.s32.totalorder %s115, %s129
      %p131 = scmp.eq.s32.totalorder %s21, 0
      %p132 = por %p130, %p131
      %s134 = sadd.s32 %s133, 1
      %p137 = scmp.eq.s32.totalorder %s15, 1
      %p138 = scmp.ne.s32.totalorder %s133, %s135
      %p139 = scmp.eq.s32.totalorder %s15, 0
      %p140 = por %p138, %p139
      %p141 = scmp.ne.s32.totalorder %s133, %s135
      %p142 = scmp.eq.s32.totalorder %s20, 1
      %p143 = por %p141, %p142
      %p144 = scmp.ne.s32.totalorder %s135, %s136
      %p145 = scmp.eq.s32.totalorder %s20, 0
      %p146 = por %p144, %p145
      %p147 = scmp.ne.s32.totalorder %s135, %s136
      %p148 = scmp.eq.s32.totalorder %s21, 1
      %p149 = por %p147, %p148
      %p151 = scmp.ne.s32.totalorder %s136, %s150
      %p152 = scmp.eq.s32.totalorder %s21, 0
      %p153 = por %p151, %p152
      %s154 = ssub.s32 %s15, %s22
      %p155 = scmp.eq.s32.totalorder %s154, 0
      %s157 = sadd.s32 %s156, 1
      %s158 = scalar_select %p155, %s156, %s157
      %p161 = pneg %p155
      %p162 = scmp.eq.s32.totalorder %s15, 1
      %p163 = por %p161, %p162
      %p164 = scmp.ne.s32.totalorder %s156, %s159
      %p165 = scmp.eq.s32.totalorder %s15, 0
      %p166 = por %p164, %p165
      %p167 = scmp.ne.s32.totalorder %s156, %s159
      %p168 = scmp.eq.s32.totalorder %s20, 1
      %p169 = por %p167, %p168
      %p170 = scmp.ne.s32.totalorder %s159, %s160
      %p171 = scmp.eq.s32.totalorder %s20, 0
      %p172 = por %p170, %p171
      %p173 = scmp.ne.s32.totalorder %s159, %s160
      %p174 = scmp.eq.s32.totalorder %s21, 1
      %p175 = por %p173, %p174
      %p177 = scmp.ne.s32.totalorder %s160, %s176
      %p178 = scmp.eq.s32.totalorder %s21, 0
      %p179 = por %p177, %p178
      %p180 = scmp.le.s32.totalorder 1, %s15
      %p181 = scmp.lt.s32.totalorder %s15, 3
      %p182 = pnand %p180, %p181
      %p183 = pneg %p182
      // Predicated region
      $region9: #{tpu_custom_call.1} parent=5 // pred_check
        _
      $region10: #{tpu_custom_call.1} parent=5 // pred_check_branch
        %185 = sbr.rel (%p182) target = $region12
      $region11: #{tpu_custom_call.1} parent=5 // pred_region
        %s186 = ssub.s32 %s15, 1
        // Predicated region
        $region13: #{tpu_custom_call.1} parent=11 // pred_check
          %p187 = pneg %p62
        $region14: #{tpu_custom_call.1} parent=11 // pred_check_branch
          %189 = sbr.rel (%p187) target = $region16
        $region15: #{tpu_custom_call.1} parent=11 // pred_region
          _
        $region16: #{tpu_custom_call.1} parent=11 // pred_fallthru
          _
        // Predicated region
        $region17: #{tpu_custom_call.1} parent=11 // pred_check
          %p190 = pneg %p83
        $region18: #{tpu_custom_call.1} parent=11 // pred_check_branch
          %192 = sbr.rel (%p190) target = $region20
        $region19: #{tpu_custom_call.1} parent=11 // pred_region
          _
        $region20: #{tpu_custom_call.1} parent=11 // pred_fallthru
          _
        // Predicated region
        $region21: #{tpu_custom_call.1} parent=11 // pred_check
          %p193 = pneg %p104
        $region22: #{tpu_custom_call.1} parent=11 // pred_check_branch
          %195 = sbr.rel (%p193) target = $region24
        $region23: #{tpu_custom_call.1} parent=11 // pred_region
          _
        $region24: #{tpu_custom_call.1} parent=11 // pred_fallthru
          _
        // Predicated region
        $region25: #{tpu_custom_call.1} parent=11 // pred_check
          %p196 = pneg %p125
        $region26: #{tpu_custom_call.1} parent=11 // pred_check_branch
          %198 = sbr.rel (%p196) target = $region28
        $region27: #{tpu_custom_call.1} parent=11 // pred_region
          _
        $region28: #{tpu_custom_call.1} parent=11 // pred_fallthru
          _
        // Predicated region
        $region29: #{tpu_custom_call.1} parent=11 // pred_check
          %p199 = pneg %p146
        $region30: #{tpu_custom_call.1} parent=11 // pred_check_branch
          %201 = sbr.rel (%p199) target = $region32
        $region31: #{tpu_custom_call.1} parent=11 // pred_region
          _
        $region32: #{tpu_custom_call.1} parent=11 // pred_fallthru
          _
      $region12: #{tpu_custom_call.1} parent=5 // pred_fallthru
        _
      %p202 = scmp.lt.s32.totalorder %s15, 2
      // Predicated region
      $region33: #{tpu_custom_call.1} parent=5 // pred_check
        %p203 = pneg %p202
      $region34: #{tpu_custom_call.1} parent=5 // pred_check_branch
        %205 = sbr.rel (%p203) target = $region36
      $region35: #{tpu_custom_call.1} parent=5 // pred_region
        // Predicated region
        $region37: #{tpu_custom_call.1} parent=35 // pred_check
          %p206 = pneg %p35
        $region38: #{tpu_custom_call.1} parent=35 // pred_check_branch
          %208 = sbr.rel (%p206) target = $region40
        $region39: #{tpu_custom_call.1} parent=35 // pred_region
          %s209 = smul.u32 2, %s15
          %p210 = scmp.lt.s32.totalorder %s209, 3
          %s211 = scalar_select %p210, %s209, 3
          %s212 = smul.addr %s211, 4
          %s213 = scalar_lea.vmem %s0, %s212
          %s214 = smul.u32 2, %s15
        $region40: #{tpu_custom_call.1} parent=35 // pred_fallthru
          _
      $region36: #{tpu_custom_call.1} parent=5 // pred_fallthru
        _
      %p215 = scmp.le.s32.totalorder 1, %s15
      %p216 = scmp.lt.s32.totalorder %s15, 3
      %p217 = pnand %p215, %p216
      %p218 = pneg %p217
      // Predicated region
      $region41: #{tpu_custom_call.1} parent=5 // pred_check
        _
      $region42: #{tpu_custom_call.1} parent=5 // pred_check_branch
        %220 = sbr.rel (%p217) target = $region44
      $region43: #{tpu_custom_call.1} parent=5 // pred_region
        %s221 = ssub.s32 %s15, 1
        %s222 = smul.u32 2, %s20
        %p223 = scmp.lt.s32.totalorder %s222, 3
        %s224 = scalar_select %p223, %s222, 3
        %s225 = smul.addr %s224, 4
        %s226 = scalar_lea.vmem %s0, %s225
        %p227 = pneg %p41
        %p228 = pneg %p38
        %p229 = pneg %p62
        %p230 = pneg %p59
        %p231 = pneg %p83
        %p232 = pneg %p80
        %p233 = pneg %p104
        %p234 = pneg %p101
        %p235 = pneg %p125
        %p236 = pneg %p122
        %p237 = pneg %p146
        %p238 = pneg %p143
        %p239 = pneg %p172
        %p240 = pneg %p169
        %s241 = sand.u32 %s159, 1
        %s242 = scalar_lea.sflag [#allocation5], %s241
        %s243 = sand.u32 %s159, 1
        %s244 = smul.addr %s243, 32
        %s245 = scalar_lea.vmem [#allocation4], %s244
        %s246 = smul.u32 2, %s20
        %p247 = scmp.lt.s32.totalorder %s246, 3
        %s248 = scalar_select %p247, %s246, 3
        %s249 = smul.addr %s248, 4
        %s250 = scalar_lea.vmem %s0, %s249
        %s251 = smul.u32 2, %s20
        %s252 = smul.u32 2, %s20
        %v254 = vld [vmem:[%s2] sm:$0xf]
        %v255 = vld [vmem:[%s2 + $0x4] sm:$0xf]
        %v256 = vld [vmem:[%s250] sm:$0xff]
        %v257 = vld [vmem:[%s5] sm:$0xff]
        %v258 = vld [vmem:[%s5 + $0x8] sm:$0xff]
        %260 = vset.pattern.permute.xlu0 0
        %261 = vperm.xlu0 %260, %v257
        %v262 = vpop.permute.xlu0 %261
        %265 = vset.pattern.permute.xlu0 0
        %266 = vperm.xlu0 %265, %v258
        %v267 = vpop.permute.xlu0 %266
        %v271 = vunpack.c.l.b16 %v254
        %v272 = vunpack.c.l.b16 %v255
        %v273 = vpack.c.b16 %v272, %v271
        %v275 = vunpack.c.l.b16 %v256
        %v276 = vunpack.c.h.b16 %v256
        %v277 = vpack.c.b16 %v275, %v275
        %v278 = vpack.c.b16 %v276, %v276
        %vm279 = vcmask 64512
        %v281 = vsel %vm279, %v273, 0
        %vm283 = vcmask 1043456
        %v285 = vsel %vm283, %v277, 0
        %v288 = vsel %vm283, %v278, 0
        %290 = vmatprep.subr.bf16.mxu0 0
        %291 = vmatpush1.bf16.msra.mxu0 0
        %292 = vmatprep.subr.bf16.mxu0 0
        %293 = vmatpush1.bf16.msra.mxu0 0
        %294 = vmatprep.subr.bf16.mxu0 0
        %295 = vmatpush1.bf16.msra.mxu0 0
        %296 = vmatprep.subr.bf16.mxu0 0
        %297 = vmatpush1.bf16.msra.mxu0 0
        %298 = vmatprep.subr.bf16.mxu0 0
        %299 = vmatpush1.bf16.msra.mxu0 0
        %300 = vmatprep.subr.bf16.mxu0 0
        %301 = vmatpush1.bf16.msra.mxu0 0
        %302 = vmatprep.subr.bf16.mxu0 0
        %303 = vmatpush1.bf16.msra.mxu0 0
        %304 = vmatprep.subr.bf16.mxu0 %v288
        %305 = vmatpush1.bf16.msra.mxu0 %v285
        %306 = vmatprep.subr.bf16.mxu0 0
        %307 = vmatpush2.bf16.msra.mxu0 0
        %308 = vmatprep.subr.bf16.mxu0 0
        %309 = vmatpush2.bf16.msra.mxu0 0
        %310 = vmatprep.subr.bf16.mxu0 0
        %311 = vmatpush2.bf16.msra.mxu0 0
        %312 = vmatprep.subr.bf16.mxu0 0
        %313 = vmatpush2.bf16.msra.mxu0 0
        %314 = vmatprep.subr.bf16.mxu0 0
        %315 = vmatpush2.bf16.msra.mxu0 0
        %316 = vmatprep.subr.bf16.mxu0 0
        %317 = vmatpush2.bf16.msra.mxu0 0
        %318 = vmatprep.subr.bf16.mxu0 0
        %319 = vmatpush2.bf16.msra.mxu0 0
        %320 = vmatprep.subr.bf16.mxu0 0
        %321 = vmatpush2.bf16.msra.mxu0 0
        %322 = vmatprep.mubr.bf16.mxu0 0
        %323 = vmatmul.mubr.bf16.gmra.mxu0 %v281
        %v324 = vpop.f32.mrf.mxu0
        %v325 = vadd.f32 %v262, %v324
        %v326 = vpop.f32.mrf.mxu0
        %v327 = vadd.f32 %v262, %v326
        %v328 = vpop.f32.mrf.mxu0
        %v329 = vadd.f32 %v267, %v328
        %v330 = vpop.f32.mrf.mxu0
        %v331 = vadd.f32 %v267, %v330
        %332 = vdwg.mxu0
        %333 = vst [vmem:[#allocation2] sm:$0xff] %v325
        %334 = vst [vmem:[#allocation2 + $0x8] sm:$0xff] %v327
        %335 = vst [vmem:[#allocation2 + $0x10] sm:$0xff] %v329
        %336 = vst [vmem:[#allocation2 + $0x18] sm:$0xff] %v331
        %s337 = scalar_lea.vmem %s5, 16
        %v338 = vld [vmem:[%s337] sm:$0xff]
        %v339 = vld [vmem:[%s337 + $0x8] sm:$0xff]
        %v340 = vld [vmem:[#allocation2] sm:$0xff]
        %v341 = vld [vmem:[#allocation2 + $0x8] sm:$0xff]
        %v342 = vld [vmem:[#allocation2 + $0x10] sm:$0xff]
        %v343 = vld [vmem:[#allocation2 + $0x18] sm:$0xff]
        %344 = vrot.lane.b32.xlu0 %v340, 17
        %v345 = vpop.permute.xlu0 %344
        %346 = vrot.lane.b32.xlu0 %v342, 17
        %v347 = vpop.permute.xlu0 %346
        %348 = vrot.lane.b32.xlu0 %v341, 17
        %v349 = vpop.permute.xlu0 %348
        %350 = vrot.lane.b32.xlu0 %v343, 17
        %v351 = vpop.permute.xlu0 %350
        %v352 = vlaneseq
        %v353 = vand.u32 %v352, 127
        %vm354 = vcmp.lt.s32.totalorder %v353, 17
        %v355 = vsel %vm354, %v345, %v349
        %v356 = vsel %vm354, %v347, %v351
        %v357 = vsel %vm354, %v349, %v345
        %v358 = vsel %vm354, %v351, %v347
        %v359 = vld [vmem:[%s1] sm:$0x3]
        %v361 = vlaneseq
        %v362 = vshrl.u32 %v361, 7
        %v363 = vsub.s32 0, %v362
        %v364 = vrot.slane %v359, %v363
        %v365 = vlaneseq
        %v366 = vshrl.u32 %v365, 7
        %v367 = vsub.s32 1, %v366
        %v368 = vrot.slane %v359, %v367
        %v371 = vmul.f32 %v357, %v364
        %v372 = vmul.f32 %v355, %v368
        %v373 = vmul.f32 %v358, %v364
        %v374 = vmul.f32 %v356, %v368
        %v375 = vpack.c.bf16 %v373, %v371
        %v376 = vpack.c.bf16 %v374, %v372
        %v379 = vunpack.c.l.b16 %v375
        %v380 = vunpack.c.l.b16 %v376
        %v381 = vunpack.c.h.b16 %v375
        %v382 = vunpack.c.h.b16 %v376
        %v383 = vpack.c.b16 %v380, %v379
        %v384 = vpack.c.b16 %v382, %v381
        %387 = vst [vmem:[#allocation3] sm:$0xff] %v383
        %388 = vst [vmem:[#allocation3 + $0x8] sm:$0xff] %v384
        %v389 = vld [vmem:[#allocation2] sm:$0xff]
        %v390 = vld [vmem:[#allocation2 + $0x8] sm:$0xff]
        %v391 = vld [vmem:[#allocation2 + $0x10] sm:$0xff]
        %v392 = vld [vmem:[#allocation2 + $0x18] sm:$0xff]
        %393 = vrot.lane.b32.xlu0 %v389, 16
        %v394 = vpop.permute.xlu0 %393
        %395 = vrot.lane.b32.xlu0 %v391, 16
        %v396 = vpop.permute.xlu0 %395
        %397 = vrot.lane.b32.xlu0 %v390, 16
        %v398 = vpop.permute.xlu0 %397
        %399 = vrot.lane.b32.xlu0 %v392, 16
        %v400 = vpop.permute.xlu0 %399
        %vm401 = vcmp.lt.s32.totalorder %v353, 16
        %v402 = vsel %vm401, %v394, %v398
        %v403 = vsel %vm401, %v396, %v400
        %v404 = vsel %vm401, %v398, %v394
        %v405 = vsel %vm401, %v400, %v396
        %s406 = scalar_lea.vmem %s1, 2
        %v407 = vld [vmem:[%s406] sm:$0x3]
        %v409 = vlaneseq
        %v410 = vshrl.u32 %v409, 7
        %v411 = vsub.s32 0, %v410
        %v412 = vrot.slane %v407, %v411
        %v413 = vlaneseq
        %v414 = vshrl.u32 %v413, 7
        %v415 = vsub.s32 1, %v414
        %v416 = vrot.slane %v407, %v415
        %v419 = vmul.f32 %v404, %v412
        %v420 = vmul.f32 %v402, %v416
        %v421 = vmul.f32 %v405, %v412
        %v422 = vmul.f32 %v403, %v416
        %v423 = vpack.c.bf16 %v421, %v419
        %v424 = vpack.c.bf16 %v422, %v420
        %v427 = vunpack.c.l.b16 %v423
        %v428 = vunpack.c.l.b16 %v424
        %v429 = vunpack.c.h.b16 %v423
        %v430 = vunpack.c.h.b16 %v424
        %v431 = vpack.c.b16 %v428, %v427
        %v432 = vpack.c.b16 %v430, %v429
        %435 = vst [vmem:[#allocation3 + $0x10] sm:$0xff] %v431
        %436 = vst [vmem:[#allocation3 + $0x18] sm:$0xff] %v432
        %v437 = vld [vmem:[#allocation2] sm:$0xff]
        %v438 = vld [vmem:[#allocation2 + $0x8] sm:$0xff]
        %v439 = vld [vmem:[#allocation2 + $0x10] sm:$0xff]
        %v440 = vld [vmem:[#allocation2 + $0x18] sm:$0xff]
        %441 = vrot.lane.b32.xlu0 %v437, 15
        %v442 = vpop.permute.xlu0 %441
        %443 = vrot.lane.b32.xlu0 %v439, 15
        %v444 = vpop.permute.xlu0 %443
        %445 = vrot.lane.b32.xlu0 %v438, 15
        %v446 = vpop.permute.xlu0 %445
        %447 = vrot.lane.b32.xlu0 %v440, 15
        %v448 = vpop.permute.xlu0 %447
        %vm449 = vcmp.lt.s32.totalorder %v353, 15
        %v450 = vsel %vm449, %v442, %v446
        %v451 = vsel %vm449, %v444, %v448
        %v452 = vsel %vm449, %v446, %v442
        %v453 = vsel %vm449, %v448, %v444
        %s454 = scalar_lea.vmem %s1, 4
        %v455 = vld [vmem:[%s454] sm:$0x3]
        %v457 = vlaneseq
        %v458 = vshrl.u32 %v457, 7
        %v459 = vsub.s32 0, %v458
        %v460 = vrot.slane %v455, %v459
        %v461 = vlaneseq
        %v462 = vshrl.u32 %v461, 7
        %v463 = vsub.s32 1, %v462
        %v464 = vrot.slane %v455, %v463
        %v467 = vmul.f32 %v452, %v460
        %v468 = vmul.f32 %v450, %v464
        %v469 = vmul.f32 %v453, %v460
        %v470 = vmul.f32 %v451, %v464
        %v471 = vpack.c.bf16 %v469, %v467
        %v472 = vpack.c.bf16 %v470, %v468
        %v475 = vunpack.c.l.b16 %v471
        %v476 = vunpack.c.l.b16 %v472
        %v477 = vunpack.c.h.b16 %v471
        %v478 = vunpack.c.h.b16 %v472
        %v479 = vpack.c.b16 %v476, %v475
        %v480 = vpack.c.b16 %v478, %v477
        %483 = vst [vmem:[#allocation3 + $0x20] sm:$0xff] %v479
        %484 = vst [vmem:[#allocation3 + $0x28] sm:$0xff] %v480
        %v485 = vld [vmem:[#allocation2] sm:$0xff]
        %v486 = vld [vmem:[#allocation2 + $0x8] sm:$0xff]
        %v487 = vld [vmem:[#allocation2 + $0x10] sm:$0xff]
        %v488 = vld [vmem:[#allocation2 + $0x18] sm:$0xff]
        %489 = vrot.lane.b32.xlu0 %v485, 1
        %v490 = vpop.permute.xlu0 %489
        %491 = vrot.lane.b32.xlu0 %v487, 1
        %v492 = vpop.permute.xlu0 %491
        %493 = vrot.lane.b32.xlu0 %v486, 1
        %v494 = vpop.permute.xlu0 %493
        %495 = vrot.lane.b32.xlu0 %v488, 1
        %v496 = vpop.permute.xlu0 %495
        %vm497 = vcmp.lt.s32.totalorder %v353, 1
        %v498 = vsel %vm497, %v490, %v494
        %v499 = vsel %vm497, %v492, %v496
        %v500 = vsel %vm497, %v494, %v490
        %v501 = vsel %vm497, %v496, %v492
        %s502 = scalar_lea.vmem %s1, 6
        %v503 = vld [vmem:[%s502] sm:$0x3]
        %v505 = vlaneseq
        %v506 = vshrl.u32 %v505, 7
        %v507 = vsub.s32 0, %v506
        %v508 = vrot.slane %v503, %v507
        %v509 = vlaneseq
        %v510 = vshrl.u32 %v509, 7
        %v511 = vsub.s32 1, %v510
        %v512 = vrot.slane %v503, %v511
        %v515 = vmul.f32 %v500, %v508
        %v516 = vmul.f32 %v498, %v512
        %v517 = vmul.f32 %v501, %v508
        %v518 = vmul.f32 %v499, %v512
        %v519 = vpack.c.bf16 %v517, %v515
        %v520 = vpack.c.bf16 %v518, %v516
        %v523 = vunpack.c.l.b16 %v519
        %v524 = vunpack.c.l.b16 %v520
        %v525 = vunpack.c.h.b16 %v519
        %v526 = vunpack.c.h.b16 %v520
        %v527 = vpack.c.b16 %v524, %v523
        %v528 = vpack.c.b16 %v526, %v525
        %531 = vst [vmem:[#allocation3 + $0x30] sm:$0xff] %v527
        %532 = vst [vmem:[#allocation3 + $0x38] sm:$0xff] %v528
        %v533 = vld [vmem:[#allocation2] sm:$0xff]
        %v534 = vld [vmem:[#allocation2 + $0x8] sm:$0xff]
        %v535 = vld [vmem:[#allocation2 + $0x10] sm:$0xff]
        %v536 = vld [vmem:[#allocation2 + $0x18] sm:$0xff]
        %v537 = vpack.c.bf16 %v535, %v533
        %v538 = vpack.c.bf16 %v536, %v534
        %v541 = vunpack.c.l.b16 %v537
        %v542 = vunpack.c.l.b16 %v538
        %v543 = vunpack.c.h.b16 %v537
        %v544 = vunpack.c.h.b16 %v538
        %v545 = vpack.c.b16 %v542, %v541
        %v546 = vpack.c.b16 %v544, %v543
        %549 = vst [vmem:[#allocation3 + $0x40] sm:$0xff] %v545
        %550 = vst [vmem:[#allocation3 + $0x48] sm:$0xff] %v546
        %v551 = vld [vmem:[#allocation2] sm:$0xff]
        %v552 = vld [vmem:[#allocation2 + $0x8] sm:$0xff]
        %v553 = vld [vmem:[#allocation2 + $0x10] sm:$0xff]
        %v554 = vld [vmem:[#allocation2 + $0x18] sm:$0xff]
        %555 = vrot.lane.b32.xlu0 %v551, 127
        %v556 = vpop.permute.xlu0 %555
        %557 = vrot.lane.b32.xlu0 %v553, 127
        %v558 = vpop.permute.xlu0 %557
        %559 = vrot.lane.b32.xlu0 %v552, 127
        %v560 = vpop.permute.xlu0 %559
        %561 = vrot.lane.b32.xlu0 %v554, 127
        %v562 = vpop.permute.xlu0 %561
        %vm563 = vcmp.lt.s32.totalorder %v353, 127
        %v564 = vsel %vm563, %v556, %v560
        %v565 = vsel %vm563, %v558, %v562
        %v566 = vsel %vm563, %v560, %v556
        %v567 = vsel %vm563, %v562, %v558
        %s568 = scalar_lea.vmem %s1, 10
        %v569 = vld [vmem:[%s568] sm:$0x3]
        %v571 = vlaneseq
        %v572 = vshrl.u32 %v571, 7
        %v573 = vsub.s32 0, %v572
        %v574 = vrot.slane %v569, %v573
        %v575 = vlaneseq
        %v576 = vshrl.u32 %v575, 7
        %v577 = vsub.s32 1, %v576
        %v578 = vrot.slane %v569, %v577
        %v581 = vmul.f32 %v564, %v574
        %v582 = vmul.f32 %v566, %v578
        %v583 = vmul.f32 %v565, %v574
        %v584 = vmul.f32 %v567, %v578
        %v585 = vpack.c.bf16 %v583, %v581
        %v586 = vpack.c.bf16 %v584, %v582
        %v589 = vunpack.c.l.b16 %v585
        %v590 = vunpack.c.l.b16 %v586
        %v591 = vunpack.c.h.b16 %v585
        %v592 = vunpack.c.h.b16 %v586
        %v593 = vpack.c.b16 %v590, %v589
        %v594 = vpack.c.b16 %v592, %v591
        %597 = vst [vmem:[#allocation3 + $0x50] sm:$0xff] %v593
        %598 = vst [vmem:[#allocation3 + $0x58] sm:$0xff] %v594
        %v599 = vld [vmem:[#allocation2] sm:$0xff]
        %v600 = vld [vmem:[#allocation2 + $0x8] sm:$0xff]
        %v601 = vld [vmem:[#allocation2 + $0x10] sm:$0xff]
        %v602 = vld [vmem:[#allocation2 + $0x18] sm:$0xff]
        %603 = vrot.lane.b32.xlu0 %v599, 113
        %v604 = vpop.permute.xlu0 %603
        %605 = vrot.lane.b32.xlu0 %v601, 113
        %v606 = vpop.permute.xlu0 %605
        %607 = vrot.lane.b32.xlu0 %v600, 113
        %v608 = vpop.permute.xlu0 %607
        %609 = vrot.lane.b32.xlu0 %v602, 113
        %v610 = vpop.permute.xlu0 %609
        %vm611 = vcmp.lt.s32.totalorder %v353, 113
        %v612 = vsel %vm611, %v604, %v608
        %v613 = vsel %vm611, %v606, %v610
        %v614 = vsel %vm611, %v608, %v604
        %v615 = vsel %vm611, %v610, %v606
        %s616 = scalar_lea.vmem %s1, 12
        %v617 = vld [vmem:[%s616] sm:$0x3]
        %v619 = vlaneseq
        %v620 = vshrl.u32 %v619, 7
        %v621 = vsub.s32 0, %v620
        %v622 = vrot.slane %v617, %v621
        %v623 = vlaneseq
        %v624 = vshrl.u32 %v623, 7
        %v625 = vsub.s32 1, %v624
        %v626 = vrot.slane %v617, %v625
        %v629 = vmul.f32 %v612, %v622
        %v630 = vmul.f32 %v614, %v626
        %v631 = vmul.f32 %v613, %v622
        %v632 = vmul.f32 %v615, %v626
        %v633 = vpack.c.bf16 %v631, %v629
        %v634 = vpack.c.bf16 %v632, %v630
        %v637 = vunpack.c.l.b16 %v633
        %v638 = vunpack.c.l.b16 %v634
        %v639 = vunpack.c.h.b16 %v633
        %v640 = vunpack.c.h.b16 %v634
        %v641 = vpack.c.b16 %v638, %v637
        %v642 = vpack.c.b16 %v640, %v639
        %645 = vst [vmem:[#allocation3 + $0x60] sm:$0xff] %v641
        %646 = vst [vmem:[#allocation3 + $0x68] sm:$0xff] %v642
        %v647 = vld [vmem:[#allocation2] sm:$0xff]
        %v648 = vld [vmem:[#allocation2 + $0x8] sm:$0xff]
        %v649 = vld [vmem:[#allocation2 + $0x10] sm:$0xff]
        %v650 = vld [vmem:[#allocation2 + $0x18] sm:$0xff]
        %651 = vrot.lane.b32.xlu0 %v647, 112
        %v652 = vpop.permute.xlu0 %651
        %653 = vrot.lane.b32.xlu0 %v649, 112
        %v654 = vpop.permute.xlu0 %653
        %655 = vrot.lane.b32.xlu0 %v648, 112
        %v656 = vpop.permute.xlu0 %655
        %657 = vrot.lane.b32.xlu0 %v650, 112
        %v658 = vpop.permute.xlu0 %657
        %vm659 = vcmp.lt.s32.totalorder %v353, 112
        %v660 = vsel %vm659, %v652, %v656
        %v661 = vsel %vm659, %v654, %v658
        %v662 = vsel %vm659, %v656, %v652
        %v663 = vsel %vm659, %v658, %v654
        %s664 = scalar_lea.vmem %s1, 14
        %v665 = vld [vmem:[%s664] sm:$0x3]
        %v667 = vlaneseq
        %v668 = vshrl.u32 %v667, 7
        %v669 = vsub.s32 0, %v668
        %v670 = vrot.slane %v665, %v669
        %v671 = vlaneseq
        %v672 = vshrl.u32 %v671, 7
        %v673 = vsub.s32 1, %v672
        %v674 = vrot.slane %v665, %v673
        %v677 = vmul.f32 %v660, %v670
        %v678 = vmul.f32 %v662, %v674
        %v679 = vmul.f32 %v661, %v670
        %v680 = vmul.f32 %v663, %v674
        %v681 = vpack.c.bf16 %v679, %v677
        %v682 = vpack.c.bf16 %v680, %v678
        %v685 = vunpack.c.l.b16 %v681
        %v686 = vunpack.c.l.b16 %v682
        %v687 = vunpack.c.h.b16 %v681
        %v688 = vunpack.c.h.b16 %v682
        %v689 = vpack.c.b16 %v686, %v685
        %v690 = vpack.c.b16 %v688, %v687
        %693 = vst [vmem:[#allocation3 + $0x70] sm:$0xff] %v689
        %694 = vst [vmem:[#allocation3 + $0x78] sm:$0xff] %v690
        %v695 = vld [vmem:[#allocation2] sm:$0xff]
        %v696 = vld [vmem:[#allocation2 + $0x8] sm:$0xff]
        %v697 = vld [vmem:[#allocation2 + $0x10] sm:$0xff]
        %v698 = vld [vmem:[#allocation2 + $0x18] sm:$0xff]
        %699 = vrot.lane.b32.xlu0 %v695, 111
        %v700 = vpop.permute.xlu0 %699
        %701 = vrot.lane.b32.xlu0 %v697, 111
        %v702 = vpop.permute.xlu0 %701
        %703 = vrot.lane.b32.xlu0 %v696, 111
        %v704 = vpop.permute.xlu0 %703
        %705 = vrot.lane.b32.xlu0 %v698, 111
        %v706 = vpop.permute.xlu0 %705
        %vm707 = vcmp.lt.s32.totalorder %v353, 111
        %v708 = vsel %vm707, %v700, %v704
        %v709 = vsel %vm707, %v702, %v706
        %v710 = vsel %vm707, %v704, %v700
        %v711 = vsel %vm707, %v706, %v702
        %s712 = scalar_lea.vmem %s1, 16
        %v713 = vld [vmem:[%s712] sm:$0x3]
        %v715 = vlaneseq
        %v716 = vshrl.u32 %v715, 7
        %v717 = vsub.s32 0, %v716
        %v718 = vrot.slane %v713, %v717
        %v719 = vlaneseq
        %v720 = vshrl.u32 %v719, 7
        %v721 = vsub.s32 1, %v720
        %v722 = vrot.slane %v713, %v721
        %v725 = vmul.f32 %v708, %v718
        %v726 = vmul.f32 %v710, %v722
        %v727 = vmul.f32 %v709, %v718
        %v728 = vmul.f32 %v711, %v722
        %v729 = vpack.c.bf16 %v727, %v725
        %v730 = vpack.c.bf16 %v728, %v726
        %v733 = vunpack.c.l.b16 %v729
        %v734 = vunpack.c.l.b16 %v730
        %v735 = vunpack.c.h.b16 %v729
        %v736 = vunpack.c.h.b16 %v730
        %v737 = vpack.c.b16 %v734, %v733
        %v738 = vpack.c.b16 %v736, %v735
        %741 = vst [vmem:[#allocation3 + $0x80] sm:$0xff] %v737
        %742 = vst [vmem:[#allocation3 + $0x88] sm:$0xff] %v738
        %v743 = vld [vmem:[%s3] sm:$0xff]
        %v744 = vld [vmem:[%s3 + $0x8] sm:$0xff]
        %v745 = vld [vmem:[#allocation3] sm:$0xff]
        %v746 = vld [vmem:[#allocation3 + $0x8] sm:$0xff]
        %v747 = vld [vmem:[#allocation3 + $0x10] sm:$0xff]
        %v748 = vld [vmem:[#allocation3 + $0x18] sm:$0xff]
        %v749 = vld [vmem:[#allocation3 + $0x20] sm:$0xff]
        %v750 = vld [vmem:[#allocation3 + $0x28] sm:$0xff]
        %v751 = vld [vmem:[#allocation3 + $0x30] sm:$0xff]
        %v752 = vld [vmem:[#allocation3 + $0x38] sm:$0xff]
        %v753 = vld [vmem:[#allocation3 + $0x40] sm:$0xff]
        %v754 = vld [vmem:[#allocation3 + $0x48] sm:$0xff]
        %v755 = vld [vmem:[#allocation3 + $0x50] sm:$0xff]
        %v756 = vld [vmem:[#allocation3 + $0x58] sm:$0xff]
        %v757 = vld [vmem:[#allocation3 + $0x60] sm:$0xff]
        %v758 = vld [vmem:[#allocation3 + $0x68] sm:$0xff]
        %v759 = vld [vmem:[#allocation3 + $0x70] sm:$0xff]
        %v760 = vld [vmem:[#allocation3 + $0x78] sm:$0xff]
        %v761 = vld [vmem:[#allocation3 + $0x80] sm:$0xff]
        %v762 = vld [vmem:[#allocation3 + $0x88] sm:$0xff]
        %764 = vset.pattern.permute.xlu0 0
        %765 = vperm.xlu0 %764, %v338
        %v766 = vpop.permute.xlu0 %765
        %769 = vset.pattern.permute.xlu0 0
        %770 = vperm.xlu0 %769, %v339
        %v771 = vpop.permute.xlu0 %770
        %v775 = vunpack.c.l.b16 %v743
        %v776 = vunpack.c.h.b16 %v743
        %v777 = vunpack.c.l.b16 %v744
        %v778 = vunpack.c.h.b16 %v744
        %v779 = vpack.c.b16 %v777, %v775
        %v780 = vpack.c.b16 %v778, %v776
        %v800 = vunpack.c.l.b16 %v745
        %v801 = vunpack.c.h.b16 %v745
        %v802 = vunpack.c.l.b16 %v746
        %v803 = vunpack.c.h.b16 %v746
        %v804 = vunpack.c.l.b16 %v747
        %v805 = vunpack.c.h.b16 %v747
        %v806 = vunpack.c.l.b16 %v748
        %v807 = vunpack.c.h.b16 %v748
        %v808 = vunpack.c.l.b16 %v749
        %v809 = vunpack.c.h.b16 %v749
        %v810 = vunpack.c.l.b16 %v750
        %v811 = vunpack.c.h.b16 %v750
        %v812 = vunpack.c.l.b16 %v751
        %v813 = vunpack.c.h.b16 %v751
        %v814 = vunpack.c.l.b16 %v752
        %v815 = vunpack.c.h.b16 %v752
        %v816 = vunpack.c.l.b16 %v753
        %v817 = vunpack.c.h.b16 %v753
        %v818 = vunpack.c.l.b16 %v754
        %v819 = vunpack.c.h.b16 %v754
        %v820 = vunpack.c.l.b16 %v755
        %v821 = vunpack.c.h.b16 %v755
        %v822 = vunpack.c.l.b16 %v756
        %v823 = vunpack.c.h.b16 %v756
        %v824 = vunpack.c.l.b16 %v757
        %v825 = vunpack.c.h.b16 %v757
        %v826 = vunpack.c.l.b16 %v758
        %v827 = vunpack.c.h.b16 %v758
        %v828 = vunpack.c.l.b16 %v759
        %v829 = vunpack.c.h.b16 %v759
        %v830 = vunpack.c.l.b16 %v760
        %v831 = vunpack.c.h.b16 %v760
        %v832 = vunpack.c.l.b16 %v761
        %v833 = vunpack.c.h.b16 %v761
        %v834 = vunpack.c.l.b16 %v762
        %v835 = vunpack.c.h.b16 %v762
        %v836 = vpack.c.b16 %v802, %v800
        %v837 = vpack.c.b16 %v803, %v801
        %v838 = vpack.c.b16 %v806, %v804
        %v839 = vpack.c.b16 %v807, %v805
        %v840 = vpack.c.b16 %v810, %v808
        %v841 = vpack.c.b16 %v811, %v809
        %v842 = vpack.c.b16 %v814, %v812
        %v843 = vpack.c.b16 %v815, %v813
        %v844 = vpack.c.b16 %v818, %v816
        %v845 = vpack.c.b16 %v819, %v817
        %v846 = vpack.c.b16 %v822, %v820
        %v847 = vpack.c.b16 %v823, %v821
        %v848 = vpack.c.b16 %v826, %v824
        %v849 = vpack.c.b16 %v827, %v825
        %v850 = vpack.c.b16 %v830, %v828
        %v851 = vpack.c.b16 %v831, %v829
        %v852 = vpack.c.b16 %v834, %v832
        %v853 = vpack.c.b16 %v835, %v833
        %vm872 = vcmask 130048
        %v874 = vsel %vm872, %v780, 0
        %876 = vmatprep.subr.bf16.mxu0 %v851
        %877 = vmatpush1.bf16.msra.mxu0 %v850
        %878 = vmatprep.subr.bf16.mxu0 %v849
        %879 = vmatpush1.bf16.msra.mxu0 %v848
        %880 = vmatprep.subr.bf16.mxu0 %v847
        %881 = vmatpush1.bf16.msra.mxu0 %v846
        %882 = vmatprep.subr.bf16.mxu0 %v845
        %883 = vmatpush1.bf16.msra.mxu0 %v844
        %884 = vmatprep.subr.bf16.mxu0 %v843
        %885 = vmatpush1.bf16.msra.mxu0 %v842
        %886 = vmatprep.subr.bf16.mxu0 %v841
        %887 = vmatpush1.bf16.msra.mxu0 %v840
        %888 = vmatprep.subr.bf16.mxu0 %v839
        %889 = vmatpush1.bf16.msra.mxu0 %v838
        %890 = vmatprep.subr.bf16.mxu0 %v837
        %891 = vmatpush1.bf16.msra.mxu0 %v836
        %892 = vmatprep.subr.bf16.mxu0 0
        %893 = vmatpush2.bf16.msra.mxu0 0
        %894 = vmatprep.subr.bf16.mxu0 0
        %895 = vmatpush2.bf16.msra.mxu0 0
        %896 = vmatprep.subr.bf16.mxu0 0
        %897 = vmatpush2.bf16.msra.mxu0 0
        %898 = vmatprep.subr.bf16.mxu0 0
        %899 = vmatpush2.bf16.msra.mxu0 0
        %900 = vmatprep.subr.bf16.mxu0 0
        %901 = vmatpush2.bf16.msra.mxu0 0
        %902 = vmatprep.subr.bf16.mxu0 0
        %903 = vmatpush2.bf16.msra.mxu0 0
        %904 = vmatprep.subr.bf16.mxu0 0
        %905 = vmatpush2.bf16.msra.mxu0 0
        %906 = vmatprep.subr.bf16.mxu0 %v853
        %907 = vmatpush2.bf16.msra.mxu0 %v852
        %908 = vmatprep.mubr.bf16.mxu0 %v874
        %909 = vmatmul.mubr.bf16.gmra.mxu0 %v779
        %v910 = vpop.f32.mrf.mxu0
        %v911 = vadd.f32 %v766, %v910
        %v912 = vpop.f32.mrf.mxu0
        %v913 = vadd.f32 %v766, %v912
        %v914 = vpop.f32.mrf.mxu0
        %v915 = vadd.f32 %v771, %v914
        %v916 = vpop.f32.mrf.mxu0
        %v917 = vadd.f32 %v771, %v916
        %918 = vdwg.mxu0
        %919 = vst [vmem:[#allocation2] sm:$0xff] %v911
        %920 = vst [vmem:[#allocation2 + $0x8] sm:$0xff] %v913
        %921 = vst [vmem:[#allocation2 + $0x10] sm:$0xff] %v915
        %922 = vst [vmem:[#allocation2 + $0x18] sm:$0xff] %v917
        %s923 = scalar_lea.vmem %s5, 32
        %v924 = vld [vmem:[%s923] sm:$0xff]
        %v925 = vld [vmem:[%s923 + $0x8] sm:$0xff]
        %v926 = vld [vmem:[#allocation2] sm:$0xff]
        %v927 = vld [vmem:[#allocation2 + $0x8] sm:$0xff]
        %v928 = vld [vmem:[#allocation2 + $0x10] sm:$0xff]
        %v929 = vld [vmem:[#allocation2 + $0x18] sm:$0xff]
        %930 = vrot.lane.b32.xlu0 %v926, 17
        %v931 = vpop.permute.xlu0 %930
        %932 = vrot.lane.b32.xlu0 %v928, 17
        %v933 = vpop.permute.xlu0 %932
        %934 = vrot.lane.b32.xlu0 %v927, 17
        %v935 = vpop.permute.xlu0 %934
        %936 = vrot.lane.b32.xlu0 %v929, 17
        %v937 = vpop.permute.xlu0 %936
        %v938 = vsel %vm354, %v931, %v935
        %v939 = vsel %vm354, %v933, %v937
        %v940 = vsel %vm354, %v935, %v931
        %v941 = vsel %vm354, %v937, %v933
        %v942 = vld [vmem:[%s1] sm:$0x3]
        %v944 = vlaneseq
        %v945 = vshrl.u32 %v944, 7
        %v946 = vsub.s32 0, %v945
        %v947 = vrot.slane %v942, %v946
        %v948 = vlaneseq
        %v949 = vshrl.u32 %v948, 7
        %v950 = vsub.s32 1, %v949
        %v951 = vrot.slane %v942, %v950
        %v954 = vmul.f32 %v940, %v947
        %v955 = vmul.f32 %v938, %v951
        %v956 = vmul.f32 %v941, %v947
        %v957 = vmul.f32 %v939, %v951
        %v958 = vpack.c.bf16 %v956, %v954
        %v959 = vpack.c.bf16 %v957, %v955
        %v962 = vunpack.c.l.b16 %v958
        %v963 = vunpack.c.l.b16 %v959
        %v964 = vunpack.c.h.b16 %v958
        %v965 = vunpack.c.h.b16 %v959
        %v966 = vpack.c.b16 %v963, %v962
        %v967 = vpack.c.b16 %v965, %v964
        %970 = vst [vmem:[#allocation3] sm:$0xff] %v966
        %971 = vst [vmem:[#allocation3 + $0x8] sm:$0xff] %v967
        %v972 = vld [vmem:[#allocation2] sm:$0xff]
        %v973 = vld [vmem:[#allocation2 + $0x8] sm:$0xff]
        %v974 = vld [vmem:[#allocation2 + $0x10] sm:$0xff]
        %v975 = vld [vmem:[#allocation2 + $0x18] sm:$0xff]
        %976 = vrot.lane.b32.xlu0 %v972, 16
        %v977 = vpop.permute.xlu0 %976
        %978 = vrot.lane.b32.xlu0 %v974, 16
        %v979 = vpop.permute.xlu0 %978
        %980 = vrot.lane.b32.xlu0 %v973, 16
        %v981 = vpop.permute.xlu0 %980
        %982 = vrot.lane.b32.xlu0 %v975, 16
        %v983 = vpop.permute.xlu0 %982
        %v984 = vsel %vm401, %v977, %v981
        %v985 = vsel %vm401, %v979, %v983
        %v986 = vsel %vm401, %v981, %v977
        %v987 = vsel %vm401, %v983, %v979
        %v988 = vld [vmem:[%s406] sm:$0x3]
        %v990 = vlaneseq
        %v991 = vshrl.u32 %v990, 7
        %v992 = vsub.s32 0, %v991
        %v993 = vrot.slane %v988, %v992
        %v994 = vlaneseq
        %v995 = vshrl.u32 %v994, 7
        %v996 = vsub.s32 1, %v995
        %v997 = vrot.slane %v988, %v996
        %v1000 = vmul.f32 %v986, %v993
        %v1001 = vmul.f32 %v984, %v997
        %v1002 = vmul.f32 %v987, %v993
        %v1003 = vmul.f32 %v985, %v997
        %v1004 = vpack.c.bf16 %v1002, %v1000
        %v1005 = vpack.c.bf16 %v1003, %v1001
        %v1008 = vunpack.c.l.b16 %v1004
        %v1009 = vunpack.c.l.b16 %v1005
        %v1010 = vunpack.c.h.b16 %v1004
        %v1011 = vunpack.c.h.b16 %v1005
        %v1012 = vpack.c.b16 %v1009, %v1008
        %v1013 = vpack.c.b16 %v1011, %v1010
        %1016 = vst [vmem:[#allocation3 + $0x10] sm:$0xff] %v1012
        %1017 = vst [vmem:[#allocation3 + $0x18] sm:$0xff] %v1013
        %v1018 = vld [vmem:[#allocation2] sm:$0xff]
        %v1019 = vld [vmem:[#allocation2 + $0x8] sm:$0xff]
        %v1020 = vld [vmem:[#allocation2 + $0x10] sm:$0xff]
        %v1021 = vld [vmem:[#allocation2 + $0x18] sm:$0xff]
        %1022 = vrot.lane.b32.xlu0 %v1018, 15
        %v1023 = vpop.permute.xlu0 %1022
        %1024 = vrot.lane.b32.xlu0 %v1020, 15
        %v1025 = vpop.permute.xlu0 %1024
        %1026 = vrot.lane.b32.xlu0 %v1019, 15
        %v1027 = vpop.permute.xlu0 %1026
        %1028 = vrot.lane.b32.xlu0 %v1021, 15
        %v1029 = vpop.permute.xlu0 %1028
        %v1030 = vsel %vm449, %v1023, %v1027
        %v1031 = vsel %vm449, %v1025, %v1029
        %v1032 = vsel %vm449, %v1027, %v1023
        %v1033 = vsel %vm449, %v1029, %v1025
        %v1034 = vld [vmem:[%s454] sm:$0x3]
        %v1036 = vlaneseq
        %v1037 = vshrl.u32 %v1036, 7
        %v1038 = vsub.s32 0, %v1037
        %v1039 = vrot.slane %v1034, %v1038
        %v1040 = vlaneseq
        %v1041 = vshrl.u32 %v1040, 7
        %v1042 = vsub.s32 1, %v1041
        %v1043 = vrot.slane %v1034, %v1042
        %v1046 = vmul.f32 %v1032, %v1039
        %v1047 = vmul.f32 %v1030, %v1043
        %v1048 = vmul.f32 %v1033, %v1039
        %v1049 = vmul.f32 %v1031, %v1043
        %v1050 = vpack.c.bf16 %v1048, %v1046
        %v1051 = vpack.c.bf16 %v1049, %v1047
        %v1054 = vunpack.c.l.b16 %v1050
        %v1055 = vunpack.c.l.b16 %v1051
        %v1056 = vunpack.c.h.b16 %v1050
        %v1057 = vunpack.c.h.b16 %v1051
        %v1058 = vpack.c.b16 %v1055, %v1054
        %v1059 = vpack.c.b16 %v1057, %v1056
        %1062 = vst [vmem:[#allocation3 + $0x20] sm:$0xff] %v1058
        %1063 = vst [vmem:[#allocation3 + $0x28] sm:$0xff] %v1059
        %v1064 = vld [vmem:[#allocation2] sm:$0xff]
        %v1065 = vld [vmem:[#allocation2 + $0x8] sm:$0xff]
        %v1066 = vld [vmem:[#allocation2 + $0x10] sm:$0xff]
        %v1067 = vld [vmem:[#allocation2 + $0x18] sm:$0xff]
        %1068 = vrot.lane.b32.xlu0 %v1064, 1
        %v1069 = vpop.permute.xlu0 %1068
        %1070 = vrot.lane.b32.xlu0 %v1066, 1
        %v1071 = vpop.permute.xlu0 %1070
        %1072 = vrot.lane.b32.xlu0 %v1065, 1
        %v1073 = vpop.permute.xlu0 %1072
        %1074 = vrot.lane.b32.xlu0 %v1067, 1
        %v1075 = vpop.permute.xlu0 %1074
        %v1076 = vsel %vm497, %v1069, %v1073
        %v1077 = vsel %vm497, %v1071, %v1075
        %v1078 = vsel %vm497, %v1073, %v1069
        %v1079 = vsel %vm497, %v1075, %v1071
        %v1080 = vld [vmem:[%s502] sm:$0x3]
        %v1082 = vlaneseq
        %v1083 = vshrl.u32 %v1082, 7
        %v1084 = vsub.s32 0, %v1083
        %v1085 = vrot.slane %v1080, %v1084
        %v1086 = vlaneseq
        %v1087 = vshrl.u32 %v1086, 7
        %v1088 = vsub.s32 1, %v1087
        %v1089 = vrot.slane %v1080, %v1088
        %v1092 = vmul.f32 %v1078, %v1085
        %v1093 = vmul.f32 %v1076, %v1089
        %v1094 = vmul.f32 %v1079, %v1085
        %v1095 = vmul.f32 %v1077, %v1089
        %v1096 = vpack.c.bf16 %v1094, %v1092
        %v1097 = vpack.c.bf16 %v1095, %v1093
        %v1100 = vunpack.c.l.b16 %v1096
        %v1101 = vunpack.c.l.b16 %v1097
        %v1102 = vunpack.c.h.b16 %v1096
        %v1103 = vunpack.c.h.b16 %v1097
        %v1104 = vpack.c.b16 %v1101, %v1100
        %v1105 = vpack.c.b16 %v1103, %v1102
        %1108 = vst [vmem:[#allocation3 + $0x30] sm:$0xff] %v1104
        %1109 = vst [vmem:[#allocation3 + $0x38] sm:$0xff] %v1105
        %v1110 = vld [vmem:[#allocation2] sm:$0xff]
        %v1111 = vld [vmem:[#allocation2 + $0x8] sm:$0xff]
        %v1112 = vld [vmem:[#allocation2 + $0x10] sm:$0xff]
        %v1113 = vld [vmem:[#allocation2 + $0x18] sm:$0xff]
        %v1114 = vpack.c.bf16 %v1112, %v1110
        %v1115 = vpack.c.bf16 %v1113, %v1111
        %v1118 = vunpack.c.l.b16 %v1114
        %v1119 = vunpack.c.l.b16 %v1115
        %v1120 = vunpack.c.h.b16 %v1114
        %v1121 = vunpack.c.h.b16 %v1115
        %v1122 = vpack.c.b16 %v1119, %v1118
        %v1123 = vpack.c.b16 %v1121, %v1120
        %1126 = vst [vmem:[#allocation3 + $0x40] sm:$0xff] %v1122
        %1127 = vst [vmem:[#allocation3 + $0x48] sm:$0xff] %v1123
        %v1128 = vld [vmem:[#allocation2] sm:$0xff]
        %v1129 = vld [vmem:[#allocation2 + $0x8] sm:$0xff]
        %v1130 = vld [vmem:[#allocation2 + $0x10] sm:$0xff]
        %v1131 = vld [vmem:[#allocation2 + $0x18] sm:$0xff]
        %1132 = vrot.lane.b32.xlu0 %v1128, 127
        %v1133 = vpop.permute.xlu0 %1132
        %1134 = vrot.lane.b32.xlu0 %v1130, 127
        %v1135 = vpop.permute.xlu0 %1134
        %1136 = vrot.lane.b32.xlu0 %v1129, 127
        %v1137 = vpop.permute.xlu0 %1136
        %1138 = vrot.lane.b32.xlu0 %v1131, 127
        %v1139 = vpop.permute.xlu0 %1138
        %v1140 = vsel %vm563, %v1133, %v1137
        %v1141 = vsel %vm563, %v1135, %v1139
        %v1142 = vsel %vm563, %v1137, %v1133
        %v1143 = vsel %vm563, %v1139, %v1135
        %v1144 = vld [vmem:[%s568] sm:$0x3]
        %v1146 = vlaneseq
        %v1147 = vshrl.u32 %v1146, 7
        %v1148 = vsub.s32 0, %v1147
        %v1149 = vrot.slane %v1144, %v1148
        %v1150 = vlaneseq
        %v1151 = vshrl.u32 %v1150, 7
        %v1152 = vsub.s32 1, %v1151
        %v1153 = vrot.slane %v1144, %v1152
        %v1156 = vmul.f32 %v1140, %v1149
        %v1157 = vmul.f32 %v1142, %v1153
        %v1158 = vmul.f32 %v1141, %v1149
        %v1159 = vmul.f32 %v1143, %v1153
        %v1160 = vpack.c.bf16 %v1158, %v1156
        %v1161 = vpack.c.bf16 %v1159, %v1157
        %v1164 = vunpack.c.l.b16 %v1160
        %v1165 = vunpack.c.l.b16 %v1161
        %v1166 = vunpack.c.h.b16 %v1160
        %v1167 = vunpack.c.h.b16 %v1161
        %v1168 = vpack.c.b16 %v1165, %v1164
        %v1169 = vpack.c.b16 %v1167, %v1166
        %1172 = vst [vmem:[#allocation3 + $0x50] sm:$0xff] %v1168
        %1173 = vst [vmem:[#allocation3 + $0x58] sm:$0xff] %v1169
        %v1174 = vld [vmem:[#allocation2] sm:$0xff]
        %v1175 = vld [vmem:[#allocation2 + $0x8] sm:$0xff]
        %v1176 = vld [vmem:[#allocation2 + $0x10] sm:$0xff]
        %v1177 = vld [vmem:[#allocation2 + $0x18] sm:$0xff]
        %1178 = vrot.lane.b32.xlu0 %v1174, 113
        %v1179 = vpop.permute.xlu0 %1178
        %1180 = vrot.lane.b32.xlu0 %v1176, 113
        %v1181 = vpop.permute.xlu0 %1180
        %1182 = vrot.lane.b32.xlu0 %v1175, 113
        %v1183 = vpop.permute.xlu0 %1182
        %1184 = vrot.lane.b32.xlu0 %v1177, 113
        %v1185 = vpop.permute.xlu0 %1184
        %v1186 = vsel %vm611, %v1179, %v1183
        %v1187 = vsel %vm611, %v1181, %v1185
        %v1188 = vsel %vm611, %v1183, %v1179
        %v1189 = vsel %vm611, %v1185, %v1181
        %v1190 = vld [vmem:[%s616] sm:$0x3]
        %v1192 = vlaneseq
        %v1193 = vshrl.u32 %v1192, 7
        %v1194 = vsub.s32 0, %v1193
        %v1195 = vrot.slane %v1190, %v1194
        %v1196 = vlaneseq
        %v1197 = vshrl.u32 %v1196, 7
        %v1198 = vsub.s32 1, %v1197
        %v1199 = vrot.slane %v1190, %v1198
        %v1202 = vmul.f32 %v1186, %v1195
        %v1203 = vmul.f32 %v1188, %v1199
        %v1204 = vmul.f32 %v1187, %v1195
        %v1205 = vmul.f32 %v1189, %v1199
        %v1206 = vpack.c.bf16 %v1204, %v1202
        %v1207 = vpack.c.bf16 %v1205, %v1203
        %v1210 = vunpack.c.l.b16 %v1206
        %v1211 = vunpack.c.l.b16 %v1207
        %v1212 = vunpack.c.h.b16 %v1206
        %v1213 = vunpack.c.h.b16 %v1207
        %v1214 = vpack.c.b16 %v1211, %v1210
        %v1215 = vpack.c.b16 %v1213, %v1212
        %1218 = vst [vmem:[#allocation3 + $0x60] sm:$0xff] %v1214
        %1219 = vst [vmem:[#allocation3 + $0x68] sm:$0xff] %v1215
        %v1220 = vld [vmem:[#allocation2] sm:$0xff]
        %v1221 = vld [vmem:[#allocation2 + $0x8] sm:$0xff]
        %v1222 = vld [vmem:[#allocation2 + $0x10] sm:$0xff]
        %v1223 = vld [vmem:[#allocation2 + $0x18] sm:$0xff]
        %1224 = vrot.lane.b32.xlu0 %v1220, 112
        %v1225 = vpop.permute.xlu0 %1224
        %1226 = vrot.lane.b32.xlu0 %v1222, 112
        %v1227 = vpop.permute.xlu0 %1226
        %1228 = vrot.lane.b32.xlu0 %v1221, 112
        %v1229 = vpop.permute.xlu0 %1228
        %1230 = vrot.lane.b32.xlu0 %v1223, 112
        %v1231 = vpop.permute.xlu0 %1230
        %v1232 = vsel %vm659, %v1225, %v1229
        %v1233 = vsel %vm659, %v1227, %v1231
        %v1234 = vsel %vm659, %v1229, %v1225
        %v1235 = vsel %vm659, %v1231, %v1227
        %v1236 = vld [vmem:[%s664] sm:$0x3]
        %v1238 = vlaneseq
        %v1239 = vshrl.u32 %v1238, 7
        %v1240 = vsub.s32 0, %v1239
        %v1241 = vrot.slane %v1236, %v1240
        %v1242 = vlaneseq
        %v1243 = vshrl.u32 %v1242, 7
        %v1244 = vsub.s32 1, %v1243
        %v1245 = vrot.slane %v1236, %v1244
        %v1248 = vmul.f32 %v1232, %v1241
        %v1249 = vmul.f32 %v1234, %v1245
        %v1250 = vmul.f32 %v1233, %v1241
        %v1251 = vmul.f32 %v1235, %v1245
        %v1252 = vpack.c.bf16 %v1250, %v1248
        %v1253 = vpack.c.bf16 %v1251, %v1249
        %v1256 = vunpack.c.l.b16 %v1252
        %v1257 = vunpack.c.l.b16 %v1253
        %v1258 = vunpack.c.h.b16 %v1252
        %v1259 = vunpack.c.h.b16 %v1253
        %v1260 = vpack.c.b16 %v1257, %v1256
        %v1261 = vpack.c.b16 %v1259, %v1258
        %1264 = vst [vmem:[#allocation3 + $0x70] sm:$0xff] %v1260
        %1265 = vst [vmem:[#allocation3 + $0x78] sm:$0xff] %v1261
        %v1266 = vld [vmem:[#allocation2] sm:$0xff]
        %v1267 = vld [vmem:[#allocation2 + $0x8] sm:$0xff]
        %v1268 = vld [vmem:[#allocation2 + $0x10] sm:$0xff]
        %v1269 = vld [vmem:[#allocation2 + $0x18] sm:$0xff]
        %1270 = vrot.lane.b32.xlu0 %v1266, 111
        %v1271 = vpop.permute.xlu0 %1270
        %1272 = vrot.lane.b32.xlu0 %v1268, 111
        %v1273 = vpop.permute.xlu0 %1272
        %1274 = vrot.lane.b32.xlu0 %v1267, 111
        %v1275 = vpop.permute.xlu0 %1274
        %1276 = vrot.lane.b32.xlu0 %v1269, 111
        %v1277 = vpop.permute.xlu0 %1276
        %v1278 = vsel %vm707, %v1271, %v1275
        %v1279 = vsel %vm707, %v1273, %v1277
        %v1280 = vsel %vm707, %v1275, %v1271
        %v1281 = vsel %vm707, %v1277, %v1273
        %v1282 = vld [vmem:[%s712] sm:$0x3]
        %v1284 = vlaneseq
        %v1285 = vshrl.u32 %v1284, 7
        %v1286 = vsub.s32 0, %v1285
        %v1287 = vrot.slane %v1282, %v1286
        %v1288 = vlaneseq
        %v1289 = vshrl.u32 %v1288, 7
        %v1290 = vsub.s32 1, %v1289
        %v1291 = vrot.slane %v1282, %v1290
        %v1294 = vmul.f32 %v1278, %v1287
        %v1295 = vmul.f32 %v1280, %v1291
        %v1296 = vmul.f32 %v1279, %v1287
        %v1297 = vmul.f32 %v1281, %v1291
        %v1298 = vpack.c.bf16 %v1296, %v1294
        %v1299 = vpack.c.bf16 %v1297, %v1295
        %v1302 = vunpack.c.l.b16 %v1298
        %v1303 = vunpack.c.l.b16 %v1299
        %v1304 = vunpack.c.h.b16 %v1298
        %v1305 = vunpack.c.h.b16 %v1299
        %v1306 = vpack.c.b16 %v1303, %v1302
        %v1307 = vpack.c.b16 %v1305, %v1304
        %1310 = vst [vmem:[#allocation3 + $0x80] sm:$0xff] %v1306
        %1311 = vst [vmem:[#allocation3 + $0x88] sm:$0xff] %v1307
        %v1312 = vld [vmem:[%s4] sm:$0xff]
        %v1313 = vld [vmem:[%s4 + $0x8] sm:$0xff]
        %v1314 = vld [vmem:[#allocation3] sm:$0xff]
        %v1315 = vld [vmem:[#allocation3 + $0x8] sm:$0xff]
        %v1316 = vld [vmem:[#allocation3 + $0x10] sm:$0xff]
        %v1317 = vld [vmem:[#allocation3 + $0x18] sm:$0xff]
        %v1318 = vld [vmem:[#allocation3 + $0x20] sm:$0xff]
        %v1319 = vld [vmem:[#allocation3 + $0x28] sm:$0xff]
        %v1320 = vld [vmem:[#allocation3 + $0x30] sm:$0xff]
        %v1321 = vld [vmem:[#allocation3 + $0x38] sm:$0xff]
        %v1322 = vld [vmem:[#allocation3 + $0x40] sm:$0xff]
        %v1323 = vld [vmem:[#allocation3 + $0x48] sm:$0xff]
        %v1324 = vld [vmem:[#allocation3 + $0x50] sm:$0xff]
        %v1325 = vld [vmem:[#allocation3 + $0x58] sm:$0xff]
        %v1326 = vld [vmem:[#allocation3 + $0x60] sm:$0xff]
        %v1327 = vld [vmem:[#allocation3 + $0x68] sm:$0xff]
        %v1328 = vld [vmem:[#allocation3 + $0x70] sm:$0xff]
        %v1329 = vld [vmem:[#allocation3 + $0x78] sm:$0xff]
        %v1330 = vld [vmem:[#allocation3 + $0x80] sm:$0xff]
        %v1331 = vld [vmem:[#allocation3 + $0x88] sm:$0xff]
        %1333 = vset.pattern.permute.xlu0 0
        %1334 = vperm.xlu0 %1333, %v924
        %v1335 = vpop.permute.xlu0 %1334
        %1338 = vset.pattern.permute.xlu0 0
        %1339 = vperm.xlu0 %1338, %v925
        %v1340 = vpop.permute.xlu0 %1339
        %v1344 = vunpack.c.l.b16 %v1312
        %v1345 = vunpack.c.h.b16 %v1312
        %v1346 = vunpack.c.l.b16 %v1313
        %v1347 = vunpack.c.h.b16 %v1313
        %v1348 = vpack.c.b16 %v1346, %v1344
        %v1349 = vpack.c.b16 %v1347, %v1345
        %v1369 = vunpack.c.l.b16 %v1314
        %v1370 = vunpack.c.h.b16 %v1314
        %v1371 = vunpack.c.l.b16 %v1315
        %v1372 = vunpack.c.h.b16 %v1315
        %v1373 = vunpack.c.l.b16 %v1316
        %v1374 = vunpack.c.h.b16 %v1316
        %v1375 = vunpack.c.l.b16 %v1317
        %v1376 = vunpack.c.h.b16 %v1317
        %v1377 = vunpack.c.l.b16 %v1318
        %v1378 = vunpack.c.h.b16 %v1318
        %v1379 = vunpack.c.l.b16 %v1319
        %v1380 = vunpack.c.h.b16 %v1319
        %v1381 = vunpack.c.l.b16 %v1320
        %v1382 = vunpack.c.h.b16 %v1320
        %v1383 = vunpack.c.l.b16 %v1321
        %v1384 = vunpack.c.h.b16 %v1321
        %v1385 = vunpack.c.l.b16 %v1322
        %v1386 = vunpack.c.h.b16 %v1322
        %v1387 = vunpack.c.l.b16 %v1323
        %v1388 = vunpack.c.h.b16 %v1323
        %v1389 = vunpack.c.l.b16 %v1324
        %v1390 = vunpack.c.h.b16 %v1324
        %v1391 = vunpack.c.l.b16 %v1325
        %v1392 = vunpack.c.h.b16 %v1325
        %v1393 = vunpack.c.l.b16 %v1326
        %v1394 = vunpack.c.h.b16 %v1326
        %v1395 = vunpack.c.l.b16 %v1327
        %v1396 = vunpack.c.h.b16 %v1327
        %v1397 = vunpack.c.l.b16 %v1328
        %v1398 = vunpack.c.h.b16 %v1328
        %v1399 = vunpack.c.l.b16 %v1329
        %v1400 = vunpack.c.h.b16 %v1329
        %v1401 = vunpack.c.l.b16 %v1330
        %v1402 = vunpack.c.h.b16 %v1330
        %v1403 = vunpack.c.l.b16 %v1331
        %v1404 = vunpack.c.h.b16 %v1331
        %v1405 = vpack.c.b16 %v1371, %v1369
        %v1406 = vpack.c.b16 %v1372, %v1370
        %v1407 = vpack.c.b16 %v1375, %v1373
        %v1408 = vpack.c.b16 %v1376, %v1374
        %v1409 = vpack.c.b16 %v1379, %v1377
        %v1410 = vpack.c.b16 %v1380, %v1378
        %v1411 = vpack.c.b16 %v1383, %v1381
        %v1412 = vpack.c.b16 %v1384, %v1382
        %v1413 = vpack.c.b16 %v1387, %v1385
        %v1414 = vpack.c.b16 %v1388, %v1386
        %v1415 = vpack.c.b16 %v1391, %v1389
        %v1416 = vpack.c.b16 %v1392, %v1390
        %v1417 = vpack.c.b16 %v1395, %v1393
        %v1418 = vpack.c.b16 %v1396, %v1394
        %v1419 = vpack.c.b16 %v1399, %v1397
        %v1420 = vpack.c.b16 %v1400, %v1398
        %v1421 = vpack.c.b16 %v1403, %v1401
        %v1422 = vpack.c.b16 %v1404, %v1402
        %v1442 = vsel %vm872, %v1349, 0
        %1444 = vmatprep.subr.bf16.mxu0 %v1420
        %1445 = vmatpush1.bf16.msra.mxu0 %v1419
        %1446 = vmatprep.subr.bf16.mxu0 %v1418
        %1447 = vmatpush1.bf16.msra.mxu0 %v1417
        %1448 = vmatprep.subr.bf16.mxu0 %v1416
        %1449 = vmatpush1.bf16.msra.mxu0 %v1415
        %1450 = vmatprep.subr.bf16.mxu0 %v1414
        %1451 = vmatpush1.bf16.msra.mxu0 %v1413
        %1452 = vmatprep.subr.bf16.mxu0 %v1412
        %1453 = vmatpush1.bf16.msra.mxu0 %v1411
        %1454 = vmatprep.subr.bf16.mxu0 %v1410
        %1455 = vmatpush1.bf16.msra.mxu0 %v1409
        %1456 = vmatprep.subr.bf16.mxu0 %v1408
        %1457 = vmatpush1.bf16.msra.mxu0 %v1407
        %1458 = vmatprep.subr.bf16.mxu0 %v1406
        %1459 = vmatpush1.bf16.msra.mxu0 %v1405
        %1460 = vmatprep.subr.bf16.mxu0 0
        %1461 = vmatpush2.bf16.msra.mxu0 0
        %1462 = vmatprep.subr.bf16.mxu0 0
        %1463 = vmatpush2.bf16.msra.mxu0 0
        %1464 = vmatprep.subr.bf16.mxu0 0
        %1465 = vmatpush2.bf16.msra.mxu0 0
        %1466 = vmatprep.subr.bf16.mxu0 0
        %1467 = vmatpush2.bf16.msra.mxu0 0
        %1468 = vmatprep.subr.bf16.mxu0 0
        %1469 = vmatpush2.bf16.msra.mxu0 0
        %1470 = vmatprep.subr.bf16.mxu0 0
        %1471 = vmatpush2.bf16.msra.mxu0 0
        %1472 = vmatprep.subr.bf16.mxu0 0
        %1473 = vmatpush2.bf16.msra.mxu0 0
        %1474 = vmatprep.subr.bf16.mxu0 %v1422
        %1475 = vmatpush2.bf16.msra.mxu0 %v1421
        %1476 = vmatprep.mubr.bf16.mxu0 %v1442
        %1477 = vmatmul.mubr.bf16.gmra.mxu0 %v1348
        %v1478 = vpop.f32.mrf.mxu0
        %v1479 = vadd.f32 %v1335, %v1478
        %v1480 = vpop.f32.mrf.mxu0
        %v1481 = vadd.f32 %v1335, %v1480
        %v1482 = vpop.f32.mrf.mxu0
        %v1483 = vadd.f32 %v1340, %v1482
        %v1484 = vpop.f32.mrf.mxu0
        %v1485 = vadd.f32 %v1340, %v1484
        %1486 = vdwg.mxu0
        %1487 = vst [vmem:[%s245] sm:$0xff] %v1479
        %1488 = vst [vmem:[%s245 + $0x8] sm:$0xff] %v1481
        %1489 = vst [vmem:[%s245 + $0x10] sm:$0xff] %v1483
        %1490 = vst [vmem:[%s245 + $0x18] sm:$0xff] %v1485
        %s1491 = sand.u32 %s159, 1
        %s1492 = scalar_lea.sflag [#allocation5], %s1491
        %s1493 = sand.u32 %s159, 1
        %s1494 = smul.addr %s1493, 32
        %s1495 = scalar_lea.vmem [#allocation4], %s1494
        // Predicated region
        $region45: #{tpu_custom_call.1} parent=43 // pred_check
          %p1496 = pneg %p169
        $region46: #{tpu_custom_call.1} parent=43 // pred_check_branch
          %1498 = sbr.rel (%p1496) target = $region48
        $region47: #{tpu_custom_call.1} parent=43 // pred_region
          %s1499 = smul.u32 2, %s20
          %s1501 = ssub.s32 512, 512
          %1502 = vsyncadd %s1492, %s1501
          %s1503 = smul.addr %s1499, 128
          %s1504 = scalar_lea.hbm %s6, %s1503
          %s1505 = sshll.u32 %s1495, 4
          %s1506 = int_to_ptr.vmem [resolvable:$true] %s1505
          %1511 = dma.vmem_to_hbm [thread:$0]  %s1506, 512, %s1504, %s1492, 256, 512, 16
        $region48: #{tpu_custom_call.1} parent=43 // pred_fallthru
          _
      $region44: #{tpu_custom_call.1} parent=5 // pred_fallthru
        _
      %p1512 = scmp.le.s32.totalorder 2, %s15
      // Predicated region
      $region49: #{tpu_custom_call.1} parent=5 // pred_check
        %p1513 = pneg %p1512
      $region50: #{tpu_custom_call.1} parent=5 // pred_check_branch
        %1515 = sbr.rel (%p1513) target = $region52
      $region51: #{tpu_custom_call.1} parent=5 // pred_region
        %s1516 = ssub.s32 %s15, 2
        // Predicated region
        $region53: #{tpu_custom_call.1} parent=51 // pred_check
          %p1517 = pneg %p175
        $region54: #{tpu_custom_call.1} parent=51 // pred_check_branch
          %1519 = sbr.rel (%p1517) target = $region56
        $region55: #{tpu_custom_call.1} parent=51 // pred_region
          %s1520 = sand.u32 %s160, 1
          %s1521 = scalar_lea.sflag [#allocation5], %s1520
          %s1522 = sand.u32 %s160, 1
          %s1523 = smul.addr %s1522, 32
          %s1524 = scalar_lea.vmem [#allocation4], %s1523
          %1525 = dma.done %s1521, 512
        $region56: #{tpu_custom_call.1} parent=51 // pred_fallthru
          _
      $region52: #{tpu_custom_call.1} parent=5 // pred_fallthru
        _
    $region6: #{tpu_custom_call.1} parent=1 // loop_footer
      %s19 = sadd.s32 1, %s15
    $region7: #{tpu_custom_call.1} parent=1 // loop_footer_branch
      %14 = sbr.rel target = $region3
    $region8: #{tpu_custom_call.1} parent=1 // loop_exit
      _
    %1526 = vsyncpa [#allocation5], 1
    %s1527 = scalar_lea.sflag [#allocation5], 1
    %1528 = vsyncpa %s1527, 1

</llo_original>
